<compile_context>
chip_gen: v7x
topology: tpu7x:2x2x1
jax: 0.10.0
libtpu: 0.0.40
codegen_flags: <defaults>
</compile_context>

<pallas_src>
import math
import functools

import jax
import jax.numpy as jnp
from jax import lax
from jax.experimental import pallas as pl
from jax.experimental.pallas import tpu as pltpu


def _decoder_layer_kernel(
    x_q_ref,                    # (tq, D)   query tile of x (also residual)
    x_kv_ref,                   # (S, D)    full sequence of x (for K/V proj)
    wq_ref, bq_ref,             # (D, D) bf16, (1, D) f32
    wk_ref, bk_ref,
    wv_ref, bv_ref,
    wo_ref, bo_ref,
    g1_ref, be1_ref,            # LayerNorm1 gamma/beta, (1, D) f32
    w1_ref, bb1_ref,            # (D, F) bf16, (1, F) f32
    w2_ref, bb2_ref,            # (F, D) bf16, (1, D) f32
    g2_ref, be2_ref,            # LayerNorm2 gamma/beta, (1, D) f32
    out_ref,                    # (tq, D)
    k_scr,                      # VMEM (H, S, d_k) bf16, persists across q tiles
    v_scr,                      # VMEM (H, S, d_k) bf16, persists across q tiles
    *,
    num_heads: int,
    tk: int,
    is_causal: bool,
):
    tq, D = x_q_ref.shape
    S = x_kv_ref.shape[0]
    H = num_heads
    d_k = D // H
    scale = 1.0 / math.sqrt(d_k)

    q_idx = pl.program_id(1)

    # --- K/V projection: once per batch element, cached in VMEM scratch ---
    # The query-tile grid axis is "arbitrary" (in-order on one core), so the
    # scratch written at q_idx == 0 is valid for all later query tiles of
    # this batch element.
    @pl.when(q_idx == 0)
    def _():
        x_kv_bf = x_kv_ref[...].astype(jnp.bfloat16)
        k = (jnp.dot(x_kv_bf, wk_ref[...], preferred_element_type=jnp.float32)
             + bk_ref[...])                               # (S, D) f32
        v = (jnp.dot(x_kv_bf, wv_ref[...], preferred_element_type=jnp.float32)
             + bv_ref[...])                               # (S, D) f32
        k_scr[...] = k.astype(jnp.bfloat16).reshape(S, H, d_k).transpose(1, 0, 2)
        v_scr[...] = v.astype(jnp.bfloat16).reshape(S, H, d_k).transpose(1, 0, 2)

    x_q_f32 = x_q_ref[...].astype(jnp.float32)            # residual path, f32
    x_q_bf = x_q_ref[...].astype(jnp.bfloat16)

    # --- Q projection for this tile (bf16 operands, f32 accumulation) ---
    q = (jnp.dot(x_q_bf, wq_ref[...], preferred_element_type=jnp.float32)
         + bq_ref[...])                                   # (tq, D) f32
    qh = q.astype(jnp.bfloat16).reshape(tq, H, d_k).transpose(1, 0, 2)

    # --- flash attention over KV tiles with online softmax ---
    q_start = q_idx * tq
    num_kv_total = S // tk
    if is_causal:
        # tq == tk: query tile q_idx only needs kv tiles 0..q_idx.
        num_kv = q_idx + 1
        row_ids = q_start + lax.broadcasted_iota(jnp.int32, (tq, tk), 0)
    else:
        num_kv = num_kv_total

    def kv_step(j, carry):
        m_i, l_i, acc = carry
        kv_start = pl.multiple_of(j * tk, tk)
        kh = k_scr[:, pl.ds(kv_start, tk), :]             # (H, tk, d_k) bf16
        vh = v_scr[:, pl.ds(kv_start, tk), :]             # (H, tk, d_k) bf16
        s = jnp.einsum("hqd,hkd->hqk", qh, kh,
                       preferred_element_type=jnp.float32) * scale  # (H,tq,tk)
        if is_causal:
            col_ids = kv_start + lax.broadcasted_iota(jnp.int32, (tq, tk), 1)
            mask = row_ids >= col_ids
            s = jnp.where(mask[None, :, :], s, jnp.float32(-1e30))
        m_new = jnp.maximum(m_i, jnp.max(s, axis=-1, keepdims=True))
        alpha = jnp.exp(m_i - m_new)
        p = jnp.exp(s - m_new)
        l_new = alpha * l_i + jnp.sum(p, axis=-1, keepdims=True)
        acc_new = alpha * acc + jnp.einsum(
            "hqk,hkd->hqd", p.astype(jnp.bfloat16), vh,
            preferred_element_type=jnp.float32)
        return m_new, l_new, acc_new

    m0 = jnp.full((H, tq, 1), -jnp.inf, jnp.float32)
    l0 = jnp.zeros((H, tq, 1), jnp.float32)
    acc0 = jnp.zeros((H, tq, d_k), jnp.float32)
    _, l_i, acc = lax.fori_loop(0, num_kv, kv_step, (m0, l0, acc0))

    # EUP reciprocal instead of a VALU divide.
    attn = acc * pl.reciprocal(l_i, approx=True)          # (H, tq, d_k) f32
    attn = attn.transpose(1, 0, 2).reshape(tq, D)         # combine heads

    # --- output projection + residual + LayerNorm1 ---
    attn_out = (jnp.dot(attn.astype(jnp.bfloat16), wo_ref[...],
                        preferred_element_type=jnp.float32) + bo_ref[...])
    y = x_q_f32 + attn_out                                # dropout == identity
    mu = jnp.mean(y, axis=-1, keepdims=True)
    var = jnp.mean(jnp.square(y - mu), axis=-1, keepdims=True)
    y = (y - mu) * lax.rsqrt(var + 1e-5) * g1_ref[...] + be1_ref[...]

    # --- position-wise feed-forward + residual + LayerNorm2 ---
    h1 = jnp.maximum(
        jnp.dot(y.astype(jnp.bfloat16), w1_ref[...],
                preferred_element_type=jnp.float32) + bb1_ref[...], 0.0)
    ff = (jnp.dot(h1.astype(jnp.bfloat16), w2_ref[...],
                  preferred_element_type=jnp.float32) + bb2_ref[...])
    z = y + ff                                            # dropout == identity
    mu2 = jnp.mean(z, axis=-1, keepdims=True)
    var2 = jnp.mean(jnp.square(z - mu2), axis=-1, keepdims=True)
    out_ref[...] = ((z - mu2) * lax.rsqrt(var2 + 1e-5)
                    * g2_ref[...] + be2_ref[...]).astype(out_ref.dtype)


def decoder_layer(x, params, *, num_heads, is_causal=True):
    """x: (B, S, D) float32. params: dict of pre-transposed (in, out) weights."""
    B, S, D = x.shape
    F = params["w1"].shape[1]
    assert D % num_heads == 0
    d_k = D // num_heads

    # Query/KV tile size: 128 when the sequence is 128-aligned, else the
    # whole (small) sequence in a single tile.
    tq = 128 if S % 128 == 0 else S
    tk = tq
    num_q_tiles = S // tq

    # Weight matrices in bf16 (MXU operands); biases / LN params stay f32.
    def bf(name):
        return params[name].astype(jnp.bfloat16)

    weights = [
        bf("wq"), params["bq"],
        bf("wk"), params["bk"],
        bf("wv"), params["bv"],
        bf("wo"), params["bo"],
        params["g1"], params["be1"],
        bf("w1"), params["bb1"],
        bf("w2"), params["bb2"],
        params["g2"], params["be2"],
    ]

    def full_spec(arr):
        nd = arr.ndim
        return pl.BlockSpec(arr.shape, lambda b, i, _nd=nd: (0,) * _nd)

    in_specs = [
        pl.BlockSpec((None, tq, D), lambda b, i: (b, i, 0)),  # x query tile
        pl.BlockSpec((None, S, D), lambda b, i: (b, 0, 0)),   # x full (K/V)
    ] + [full_spec(a) for a in weights]

    kernel = functools.partial(
        _decoder_layer_kernel, num_heads=num_heads, tk=tk, is_causal=is_causal)

    # K/V now projected once per batch element (not per query tile).
    flops = 2 * B * S * (4 * D * D + 2 * S * D + 2 * D * F)
    transcendentals = B * num_heads * S * S + 4 * B * S
    weight_bytes = sum(int(a.size) * a.dtype.itemsize for a in weights)
    bytes_accessed = 3 * int(x.nbytes) + weight_bytes

    return pl.pallas_call(
        kernel,
        out_shape=jax.ShapeDtypeStruct((B, S, D), x.dtype),
        grid_spec=pltpu.PrefetchScalarGridSpec(
            num_scalar_prefetch=0,
            grid=(B, num_q_tiles),
            in_specs=in_specs,
            out_specs=pl.BlockSpec((None, tq, D), lambda b, i: (b, i, 0)),
            scratch_shapes=[
                pltpu.VMEM((num_heads, S, d_k), jnp.bfloat16),
                pltpu.VMEM((num_heads, S, d_k), jnp.bfloat16),
            ],
        ),
        compiler_params=pltpu.CompilerParams(
            # Query-tile axis must be "arbitrary": the K/V scratch written at
            # q_idx == 0 is reused by later query tiles of the same batch.
            dimension_semantics=("parallel", "arbitrary"),
            vmem_limit_bytes=64 * 1024 * 1024,
        ),
        cost_estimate=pl.CostEstimate(
            flops=flops,
            transcendentals=transcendentals,
            bytes_accessed=bytes_accessed,
        ),
    )(x, x, *weights)


# ---------------------------------------------------------------------------
# pure-JAX reference (f32) for verification
# ---------------------------------------------------------------------------
def decoder_layer_ref(x, p, *, num_heads, is_causal=True):
    B, S, D = x.shape
    d_k = D // num_heads

    def linear(t, w, b):
        return jnp.einsum("bsd,df->bsf", t, w) + b

    q = linear(x, p["wq"], p["bq"]).reshape(B, S, num_heads, d_k).transpose(0, 2, 1, 3)
    k = linear(x, p["wk"], p["bk"]).reshape(B, S, num_heads, d_k).transpose(0, 2, 1, 3)
    v = linear(x, p["wv"], p["bv"]).reshape(B, S, num_heads, d_k).transpose(0, 2, 1, 3)
    s = jnp.einsum("bhqd,bhkd->bhqk", q, k) / math.sqrt(d_k)
    if is_causal:
        mask = jnp.tril(jnp.ones((S, S), dtype=bool))
        s = jnp.where(mask, s, -1e30)
    a = jax.nn.softmax(s, axis=-1)
    o = jnp.einsum("bhqk,bhkd->bhqd", a, v).transpose(0, 2, 1, 3).reshape(B, S, D)
    o = linear(o, p["wo"], p["bo"])

    def ln(t, g, b):
        mu = jnp.mean(t, axis=-1, keepdims=True)
        var = jnp.mean((t - mu) ** 2, axis=-1, keepdims=True)
        return (t - mu) * lax.rsqrt(var + 1e-5) * g + b

    y = ln(x + o, p["g1"], p["be1"])
    h1 = jnp.maximum(linear(y, p["w1"], p["bb1"]), 0.0)
    ff = linear(h1, p["w2"], p["bb2"])
    return ln(y + ff, p["g2"], p["be2"])


if __name__ == "__main__":
    # small shapes consistent with the module
    B, S, D, H, F = 2, 8, 32, 4, 64

    key = jax.random.PRNGKey(0)
    ks = jax.random.split(key, 12)
    sc = 0.1

    params = {
        # Linear weights stored pre-transposed: (in_features, out_features)
        "wq": sc * jax.random.normal(ks[0], (D, D), jnp.float32),
        "bq": sc * jax.random.normal(ks[1], (1, D), jnp.float32),
        "wk": sc * jax.random.normal(ks[2], (D, D), jnp.float32),
        "bk": sc * jax.random.normal(ks[3], (1, D), jnp.float32),
        "wv": sc * jax.random.normal(ks[4], (D, D), jnp.float32),
        "bv": sc * jax.random.normal(ks[5], (1, D), jnp.float32),
        "wo": sc * jax.random.normal(ks[6], (D, D), jnp.float32),
        "bo": sc * jax.random.normal(ks[7], (1, D), jnp.float32),
        "g1": jnp.ones((1, D), jnp.float32),   # LayerNorm defaults
        "be1": jnp.zeros((1, D), jnp.float32),
        "w1": sc * jax.random.normal(ks[8], (D, F), jnp.float32),
        "bb1": sc * jax.random.normal(ks[9], (1, F), jnp.float32),
        "w2": sc * jax.random.normal(ks[10], (F, D), jnp.float32),
        "bb2": sc * jax.random.normal(ks[11], (1, D), jnp.float32),
        "g2": jnp.ones((1, D), jnp.float32),
        "be2": jnp.zeros((1, D), jnp.float32),
    }

    x = jax.random.normal(jax.random.PRNGKey(42), (B, S, D), jnp.float32)

    out = decoder_layer(x, params, num_heads=H, is_causal=True)
    out = jax.block_until_ready(out)

    ref = decoder_layer_ref(x, params, num_heads=H, is_causal=True)
    assert out.shape == (B, S, D)
    # bf16 matmul operands -> relaxed tolerance vs the f32 reference.
    assert jnp.allclose(out, ref, atol=5e-2, rtol=5e-2), "mismatch vs reference"

    print("KERNEL_OK")
</pallas_src>

<mosaic_0001>
module attributes {stable_mosaic.version = 11 : i64} {
  func.func @_decoder_layer_kernel(%arg0: i32, %arg1: i32, %arg2: memref<1x8x32xf32, #tpu.memory_space<vmem>>, %arg3: memref<1x8x32xf32, #tpu.memory_space<vmem>>, %arg4: memref<32x32xbf16, #tpu.memory_space<vmem>>, %arg5: memref<1x32xf32, #tpu.memory_space<vmem>>, %arg6: memref<32x32xbf16, #tpu.memory_space<vmem>>, %arg7: memref<1x32xf32, #tpu.memory_space<vmem>>, %arg8: memref<32x32xbf16, #tpu.memory_space<vmem>>, %arg9: memref<1x32xf32, #tpu.memory_space<vmem>>, %arg10: memref<32x32xbf16, #tpu.memory_space<vmem>>, %arg11: memref<1x32xf32, #tpu.memory_space<vmem>>, %arg12: memref<1x32xf32, #tpu.memory_space<vmem>>, %arg13: memref<1x32xf32, #tpu.memory_space<vmem>>, %arg14: memref<32x64xbf16, #tpu.memory_space<vmem>>, %arg15: memref<1x64xf32, #tpu.memory_space<vmem>>, %arg16: memref<64x32xbf16, #tpu.memory_space<vmem>>, %arg17: memref<1x32xf32, #tpu.memory_space<vmem>>, %arg18: memref<1x32xf32, #tpu.memory_space<vmem>>, %arg19: memref<1x32xf32, #tpu.memory_space<vmem>>, %arg20: memref<1x8x32xf32, #tpu.memory_space<vmem>>, %arg21: memref<4x8x8xbf16, #tpu.memory_space<vmem>>, %arg22: memref<4x8x8xbf16, #tpu.memory_space<vmem>>) attributes {dimension_semantics = [#tpu.dimension_semantics<parallel>, #tpu.dimension_semantics<arbitrary>], iteration_bounds = array<i64: 2, 1>, scalar_prefetch = 0 : i64, scratch_operands = 2 : i64, tpu.core_type = #tpu.core_type<tc>, window_params = [{transform_indices = @transform_0, window_bounds = array<i64: 1, 8, 32>}, {transform_indices = @transform_1, window_bounds = array<i64: 1, 8, 32>}, {pipeline_mode = #tpu.pipeline_mode<synchronous>, transform_indices = @transform_2, window_bounds = array<i64: 32, 32>}, {pipeline_mode = #tpu.pipeline_mode<synchronous>, transform_indices = @transform_3, window_bounds = array<i64: 1, 32>}, {pipeline_mode = #tpu.pipeline_mode<synchronous>, transform_indices = @transform_4, window_bounds = array<i64: 32, 32>}, {pipeline_mode = #tpu.pipeline_mode<synchronous>, transform_indices = @transform_5, window_bounds = array<i64: 1, 32>}, {pipeline_mode = #tpu.pipeline_mode<synchronous>, transform_indices = @transform_6, window_bounds = array<i64: 32, 32>}, {pipeline_mode = #tpu.pipeline_mode<synchronous>, transform_indices = @transform_7, window_bounds = array<i64: 1, 32>}, {pipeline_mode = #tpu.pipeline_mode<synchronous>, transform_indices = @transform_8, window_bounds = array<i64: 32, 32>}, {pipeline_mode = #tpu.pipeline_mode<synchronous>, transform_indices = @transform_9, window_bounds = array<i64: 1, 32>}, {pipeline_mode = #tpu.pipeline_mode<synchronous>, transform_indices = @transform_10, window_bounds = array<i64: 1, 32>}, {pipeline_mode = #tpu.pipeline_mode<synchronous>, transform_indices = @transform_11, window_bounds = array<i64: 1, 32>}, {pipeline_mode = #tpu.pipeline_mode<synchronous>, transform_indices = @transform_12, window_bounds = array<i64: 32, 64>}, {pipeline_mode = #tpu.pipeline_mode<synchronous>, transform_indices = @transform_13, window_bounds = array<i64: 1, 64>}, {pipeline_mode = #tpu.pipeline_mode<synchronous>, transform_indices = @transform_14, window_bounds = array<i64: 64, 32>}, {pipeline_mode = #tpu.pipeline_mode<synchronous>, transform_indices = @transform_15, window_bounds = array<i64: 1, 32>}, {pipeline_mode = #tpu.pipeline_mode<synchronous>, transform_indices = @transform_16, window_bounds = array<i64: 1, 32>}, {pipeline_mode = #tpu.pipeline_mode<synchronous>, transform_indices = @transform_17, window_bounds = array<i64: 1, 32>}, {transform_indices = @transform_18, window_bounds = array<i64: 1, 8, 32>}]} {
    %c0_i32 = arith.constant 0 : i32
    %0 = arith.cmpi eq, %arg1, %c0_i32 : i32
    %1 = arith.extui %0 : i1 to i32
    %c0_i32_0 = arith.constant 0 : i32
    %2 = arith.cmpi ne, %1, %c0_i32_0 : i32
    scf.if %2 {
      %c0_52 = arith.constant 0 : index
      %c0_53 = arith.constant 0 : index
      %c0_54 = arith.constant 0 : index
      %105 = vector.load %arg3[%c0_52, %c0_53, %c0_54] : memref<1x8x32xf32, #tpu.memory_space<vmem>>, vector<1x8x32xf32>
      %106 = vector.shape_cast %105 : vector<1x8x32xf32> to vector<8x32xf32>
      %107 = arith.truncf %106 : vector<8x32xf32> to vector<8x32xbf16>
      %c0_55 = arith.constant 0 : index
      %c0_56 = arith.constant 0 : index
      %108 = vector.load %arg6[%c0_55, %c0_56] : memref<32x32xbf16, #tpu.memory_space<vmem>>, vector<32x32xbf16>
      %cst_57 = arith.constant dense<0.000000e+00> : vector<8x32xf32>
      %109 = tpu.matmul %107, %108, %cst_57 {dimension_numbers = #tpu.dot_dimension_numbers<[1], [0], [0], [1], [0, 0, 1, 1], [], []>} : vector<8x32xbf16>, vector<32x32xbf16>, vector<8x32xf32> -> vector<8x32xf32>
      %c0_58 = arith.constant 0 : index
      %c0_59 = arith.constant 0 : index
      %110 = vector.load %arg7[%c0_58, %c0_59] : memref<1x32xf32, #tpu.memory_space<vmem>>, vector<1x32xf32>
      %111 = vector.broadcast %110 : vector<1x32xf32> to vector<8x32xf32>
      %112 = arith.addf %109, %111 : vector<8x32xf32>
      %c0_60 = arith.constant 0 : index
      %c0_61 = arith.constant 0 : index
      %113 = vector.load %arg8[%c0_60, %c0_61] : memref<32x32xbf16, #tpu.memory_space<vmem>>, vector<32x32xbf16>
      %cst_62 = arith.constant dense<0.000000e+00> : vector<8x32xf32>
      %114 = tpu.matmul %107, %113, %cst_62 {dimension_numbers = #tpu.dot_dimension_numbers<[1], [0], [0], [1], [0, 0, 1, 1], [], []>} : vector<8x32xbf16>, vector<32x32xbf16>, vector<8x32xf32> -> vector<8x32xf32>
      %c0_63 = arith.constant 0 : index
      %c0_64 = arith.constant 0 : index
      %115 = vector.load %arg9[%c0_63, %c0_64] : memref<1x32xf32, #tpu.memory_space<vmem>>, vector<1x32xf32>
      %116 = vector.broadcast %115 : vector<1x32xf32> to vector<8x32xf32>
      %117 = arith.addf %114, %116 : vector<8x32xf32>
      %118 = arith.truncf %112 : vector<8x32xf32> to vector<8x32xbf16>
      %119 = vector.shape_cast %118 : vector<8x32xbf16> to vector<8x4x8xbf16>
      %120 = tpu.transpose %119, [1, 0, 2] : vector<8x4x8xbf16> -> vector<4x8x8xbf16>
      %c0_65 = arith.constant 0 : index
      %c0_66 = arith.constant 0 : index
      %c0_67 = arith.constant 0 : index
      %121 = vector.load %arg21[%c0_65, %c0_66, %c0_67] : memref<4x8x8xbf16, #tpu.memory_space<vmem>>, vector<4x8x8xbf16>
      tpu.vector_store %arg21[%c0_65, %c0_66, %c0_67], %120 {strides = array<i32>} : memref<4x8x8xbf16, #tpu.memory_space<vmem>>, vector<4x8x8xbf16>,
      %122 = arith.truncf %117 : vector<8x32xf32> to vector<8x32xbf16>
      %123 = vector.shape_cast %122 : vector<8x32xbf16> to vector<8x4x8xbf16>
      %124 = tpu.transpose %123, [1, 0, 2] : vector<8x4x8xbf16> -> vector<4x8x8xbf16>
      %c0_68 = arith.constant 0 : index
      %c0_69 = arith.constant 0 : index
      %c0_70 = arith.constant 0 : index
      %125 = vector.load %arg22[%c0_68, %c0_69, %c0_70] : memref<4x8x8xbf16, #tpu.memory_space<vmem>>, vector<4x8x8xbf16>
      tpu.vector_store %arg22[%c0_68, %c0_69, %c0_70], %124 {strides = array<i32>} : memref<4x8x8xbf16, #tpu.memory_space<vmem>>, vector<4x8x8xbf16>,
    } else {
    }
    %c0 = arith.constant 0 : index
    %c0_1 = arith.constant 0 : index
    %c0_2 = arith.constant 0 : index
    %3 = vector.load %arg2[%c0, %c0_1, %c0_2] : memref<1x8x32xf32, #tpu.memory_space<vmem>>, vector<1x8x32xf32>
    %4 = vector.shape_cast %3 : vector<1x8x32xf32> to vector<8x32xf32>
    %c0_3 = arith.constant 0 : index
    %c0_4 = arith.constant 0 : index
    %c0_5 = arith.constant 0 : index
    %5 = vector.load %arg2[%c0_3, %c0_4, %c0_5] : memref<1x8x32xf32, #tpu.memory_space<vmem>>, vector<1x8x32xf32>
    %6 = vector.shape_cast %5 : vector<1x8x32xf32> to vector<8x32xf32>
    %7 = arith.truncf %6 : vector<8x32xf32> to vector<8x32xbf16>
    %c0_6 = arith.constant 0 : index
    %c0_7 = arith.constant 0 : index
    %8 = vector.load %arg4[%c0_6, %c0_7] : memref<32x32xbf16, #tpu.memory_space<vmem>>, vector<32x32xbf16>
    %cst = arith.constant dense<0.000000e+00> : vector<8x32xf32>
    %9 = tpu.matmul %7, %8, %cst {dimension_numbers = #tpu.dot_dimension_numbers<[1], [0], [0], [1], [0, 0, 1, 1], [], []>} : vector<8x32xbf16>, vector<32x32xbf16>, vector<8x32xf32> -> vector<8x32xf32>
    %c0_8 = arith.constant 0 : index
    %c0_9 = arith.constant 0 : index
    %10 = vector.load %arg5[%c0_8, %c0_9] : memref<1x32xf32, #tpu.memory_space<vmem>>, vector<1x32xf32>
    %11 = vector.broadcast %10 : vector<1x32xf32> to vector<8x32xf32>
    %12 = arith.addf %9, %11 : vector<8x32xf32>
    %13 = arith.truncf %12 : vector<8x32xf32> to vector<8x32xbf16>
    %14 = vector.shape_cast %13 : vector<8x32xbf16> to vector<8x4x8xbf16>
    %15 = tpu.transpose %14, [1, 0, 2] : vector<8x4x8xbf16> -> vector<4x8x8xbf16>
    %c8_i32 = arith.constant 8 : i32
    %16 = arith.muli %arg1, %c8_i32 : i32
    %c1_i32 = arith.constant 1 : i32
    %17 = arith.addi %arg1, %c1_i32 : i32
    %18 = tpu.iota {dimensions = array<i32: 0>} : vector<8x8xi32>
    %19 = vector.broadcast %16 : i32 to vector<8x8xi32>
    %20 = arith.addi %19, %18 : vector<8x8xi32>
    %cst_10 = arith.constant 0xFF800000 : f32
    %21 = vector.broadcast %cst_10 : f32 to vector<4x8x1xf32>
    %cst_11 = arith.constant 0.000000e+00 : f32
    %22 = vector.broadcast %cst_11 : f32 to vector<4x8x1xf32>
    %cst_12 = arith.constant 0.000000e+00 : f32
    %23 = vector.broadcast %cst_12 : f32 to vector<4x8x8xf32>
    %c0_i32_13 = arith.constant 0 : i32
    %24 = arith.subi %17, %c0_i32_13 : i32
    %25 = arith.addi %c0_i32_13, %24 : i32
    %c1_i32_14 = arith.constant 1 : i32
    %26:3 = scf.for %arg23 = %c0_i32_13 to %25 step %c1_i32_14 iter_args(%arg24 = %21, %arg25 = %22, %arg26 = %23) -> (vector<4x8x1xf32>, vector<4x8x1xf32>, vector<4x8x8xf32>)  : i32 {
      %c8_i32_52 = arith.constant 8 : i32
      %105 = arith.muli %arg23, %c8_i32_52 : i32
      %106 = tpu.assume_multiple %105, 8 : i32
      %c0_53 = arith.constant 0 : index
      %107 = arith.index_cast %106 : i32 to index
      %c0_54 = arith.constant 0 : index
      %108 = vector.load %arg21[%c0_53, %107, %c0_54] : memref<4x8x8xbf16, #tpu.memory_space<vmem>>, vector<4x8x8xbf16>
      %c0_55 = arith.constant 0 : index
      %109 = arith.index_cast %106 : i32 to index
      %c0_56 = arith.constant 0 : index
      %110 = vector.load %arg22[%c0_55, %109, %c0_56] : memref<4x8x8xbf16, #tpu.memory_space<vmem>>, vector<4x8x8xbf16>
      "tpu.trace_start"() <{level = 10 : i32, message = "hqd,hkd->hqk"}> : () -> ()
      %cst_57 = arith.constant dense<0.000000e+00> : vector<4x8x8xf32>
      %111 = tpu.matmul %15, %108, %cst_57 {dimension_numbers = #tpu.dot_dimension_numbers<[2], [2], [1], [1], [0, 0, 0, 1, 1, 1], [0], [0]>} : vector<4x8x8xbf16>, vector<4x8x8xbf16>, vector<4x8x8xf32> -> vector<4x8x8xf32>
      "tpu.trace_stop"() : () -> ()
      %cst_58 = arith.constant 0.353553385 : f32
      %112 = vector.broadcast %cst_58 : f32 to vector<4x8x8xf32>
      %113 = arith.mulf %111, %112 : vector<4x8x8xf32>
      %114 = tpu.iota {dimensions = array<i32: 1>} : vector<8x8xi32>
      %115 = vector.broadcast %106 : i32 to vector<8x8xi32>
      %116 = arith.addi %115, %114 : vector<8x8xi32>
      %117 = arith.cmpi sge, %20, %116 : vector<8x8xi32>
      %118 = vector.shape_cast %117 : vector<8x8xi1> to vector<1x8x8xi1>
      %cst_59 = arith.constant -1.000000e+30 : f32
      %119 = vector.shape_cast %118 : vector<1x8x8xi1> to vector<1x8x8xi1>
      %120 = vector.broadcast %119 : vector<1x8x8xi1> to vector<4x8x8xi1>
      %121 = vector.broadcast %cst_59 : f32 to vector<4x8x8xf32>
      %122 = arith.select %120, %113, %121 : vector<4x8x8xi1>, vector<4x8x8xf32>
      %cst_60 = arith.constant dense<0xFF800000> : vector<4x8xf32>
      %123 = vector.multi_reduction <maximumf>, %122, %cst_60 [2] : vector<4x8x8xf32> to vector<4x8xf32>
      %124 = vector.shape_cast %123 : vector<4x8xf32> to vector<4x8x1xf32>
      %125 = arith.maximumf %arg24, %124 : vector<4x8x1xf32>
      %126 = arith.subf %arg24, %125 : vector<4x8x1xf32>
      %127 = math.exp %126 : vector<4x8x1xf32>
      %128 = vector.broadcast %125 : vector<4x8x1xf32> to vector<4x8x8xf32>
      %129 = arith.subf %122, %128 : vector<4x8x8xf32>
      %130 = math.exp %129 : vector<4x8x8xf32>
      %131 = arith.mulf %127, %arg25 : vector<4x8x1xf32>
      %cst_61 = arith.constant dense<0.000000e+00> : vector<4x8xf32>
      %132 = vector.multi_reduction <add>, %130, %cst_61 [2] : vector<4x8x8xf32> to vector<4x8xf32>
      %133 = vector.shape_cast %132 : vector<4x8xf32> to vector<4x8x1xf32>
      %134 = arith.addf %131, %133 : vector<4x8x1xf32>
      %135 = vector.broadcast %127 : vector<4x8x1xf32> to vector<4x8x8xf32>
      %136 = arith.mulf %135, %arg26 : vector<4x8x8xf32>
      %137 = arith.truncf %130 : vector<4x8x8xf32> to vector<4x8x8xbf16>
      "tpu.trace_start"() <{level = 10 : i32, message = "hqk,hkd->hqd"}> : () -> ()
      %cst_62 = arith.constant dense<0.000000e+00> : vector<4x8x8xf32>
      %138 = tpu.matmul %137, %110, %cst_62 {dimension_numbers = #tpu.dot_dimension_numbers<[2], [1], [1], [2], [0, 0, 0, 1, 1, 2], [0], [0]>} : vector<4x8x8xbf16>, vector<4x8x8xbf16>, vector<4x8x8xf32> -> vector<4x8x8xf32>
      "tpu.trace_stop"() : () -> ()
      %139 = arith.addf %136, %138 : vector<4x8x8xf32>
      scf.yield %125, %134, %139 : vector<4x8x1xf32>, vector<4x8x1xf32>, vector<4x8x8xf32>
    }
    %27 = tpu.reciprocal %26#1 {approx = true} : vector<4x8x1xf32> -> vector<4x8x1xf32>
    %28 = vector.broadcast %27 : vector<4x8x1xf32> to vector<4x8x8xf32>
    %29 = arith.mulf %26#2, %28 : vector<4x8x8xf32>
    %30 = tpu.transpose %29, [1, 0, 2] : vector<4x8x8xf32> -> vector<8x4x8xf32>
    %31 = vector.shape_cast %30 : vector<8x4x8xf32> to vector<8x32xf32>
    %32 = arith.truncf %31 : vector<8x32xf32> to vector<8x32xbf16>
    %c0_15 = arith.constant 0 : index
    %c0_16 = arith.constant 0 : index
    %33 = vector.load %arg10[%c0_15, %c0_16] : memref<32x32xbf16, #tpu.memory_space<vmem>>, vector<32x32xbf16>
    %cst_17 = arith.constant dense<0.000000e+00> : vector<8x32xf32>
    %34 = tpu.matmul %32, %33, %cst_17 {dimension_numbers = #tpu.dot_dimension_numbers<[1], [0], [0], [1], [0, 0, 1, 1], [], []>} : vector<8x32xbf16>, vector<32x32xbf16>, vector<8x32xf32> -> vector<8x32xf32>
    %c0_18 = arith.constant 0 : index
    %c0_19 = arith.constant 0 : index
    %35 = vector.load %arg11[%c0_18, %c0_19] : memref<1x32xf32, #tpu.memory_space<vmem>>, vector<1x32xf32>
    %36 = vector.broadcast %35 : vector<1x32xf32> to vector<8x32xf32>
    %37 = arith.addf %34, %36 : vector<8x32xf32>
    %38 = arith.addf %4, %37 : vector<8x32xf32>
    %cst_20 = arith.constant dense<0.000000e+00> : vector<8xf32>
    %39 = vector.multi_reduction <add>, %38, %cst_20 [1] : vector<8x32xf32> to vector<8xf32>
    %40 = vector.shape_cast %39 : vector<8xf32> to vector<8x1xf32>
    %cst_21 = arith.constant 3.200000e+01 : f32
    %41 = vector.broadcast %cst_21 : f32 to vector<8x1xf32>
    %42 = arith.divf %40, %41 : vector<8x1xf32>
    %43 = vector.broadcast %42 : vector<8x1xf32> to vector<8x32xf32>
    %44 = arith.subf %38, %43 : vector<8x32xf32>
    %45 = arith.mulf %44, %44 : vector<8x32xf32>
    %cst_22 = arith.constant dense<0.000000e+00> : vector<8xf32>
    %46 = vector.multi_reduction <add>, %45, %cst_22 [1] : vector<8x32xf32> to vector<8xf32>
    %47 = vector.shape_cast %46 : vector<8xf32> to vector<8x1xf32>
    %cst_23 = arith.constant 3.200000e+01 : f32
    %48 = vector.broadcast %cst_23 : f32 to vector<8x1xf32>
    %49 = arith.divf %47, %48 : vector<8x1xf32>
    %50 = vector.broadcast %42 : vector<8x1xf32> to vector<8x32xf32>
    %51 = arith.subf %38, %50 : vector<8x32xf32>
    %cst_24 = arith.constant 9.99999974E-6 : f32
    %52 = vector.broadcast %cst_24 : f32 to vector<8x1xf32>
    %53 = arith.addf %49, %52 : vector<8x1xf32>
    %54 = math.rsqrt %53 : vector<8x1xf32>
    %55 = vector.broadcast %54 : vector<8x1xf32> to vector<8x32xf32>
    %56 = arith.mulf %51, %55 : vector<8x32xf32>
    %c0_25 = arith.constant 0 : index
    %c0_26 = arith.constant 0 : index
    %57 = vector.load %arg12[%c0_25, %c0_26] : memref<1x32xf32, #tpu.memory_space<vmem>>, vector<1x32xf32>
    %58 = vector.broadcast %57 : vector<1x32xf32> to vector<8x32xf32>
    %59 = arith.mulf %56, %58 : vector<8x32xf32>
    %c0_27 = arith.constant 0 : index
    %c0_28 = arith.constant 0 : index
    %60 = vector.load %arg13[%c0_27, %c0_28] : memref<1x32xf32, #tpu.memory_space<vmem>>, vector<1x32xf32>
    %61 = vector.broadcast %60 : vector<1x32xf32> to vector<8x32xf32>
    %62 = arith.addf %59, %61 : vector<8x32xf32>
    %63 = arith.truncf %62 : vector<8x32xf32> to vector<8x32xbf16>
    %c0_29 = arith.constant 0 : index
    %c0_30 = arith.constant 0 : index
    %64 = vector.load %arg14[%c0_29, %c0_30] : memref<32x64xbf16, #tpu.memory_space<vmem>>, vector<32x64xbf16>
    %cst_31 = arith.constant dense<0.000000e+00> : vector<8x64xf32>
    %65 = tpu.matmul %63, %64, %cst_31 {dimension_numbers = #tpu.dot_dimension_numbers<[1], [0], [0], [1], [0, 0, 1, 1], [], []>} : vector<8x32xbf16>, vector<32x64xbf16>, vector<8x64xf32> -> vector<8x64xf32>
    %c0_32 = arith.constant 0 : index
    %c0_33 = arith.constant 0 : index
    %66 = vector.load %arg15[%c0_32, %c0_33] : memref<1x64xf32, #tpu.memory_space<vmem>>, vector<1x64xf32>
    %67 = vector.broadcast %66 : vector<1x64xf32> to vector<8x64xf32>
    %68 = arith.addf %65, %67 : vector<8x64xf32>
    %cst_34 = arith.constant 0.000000e+00 : f32
    %69 = vector.broadcast %cst_34 : f32 to vector<8x64xf32>
    %70 = arith.maximumf %68, %69 : vector<8x64xf32>
    %71 = arith.truncf %70 : vector<8x64xf32> to vector<8x64xbf16>
    %c0_35 = arith.constant 0 : index
    %c0_36 = arith.constant 0 : index
    %72 = vector.load %arg16[%c0_35, %c0_36] : memref<64x32xbf16, #tpu.memory_space<vmem>>, vector<64x32xbf16>
    %cst_37 = arith.constant dense<0.000000e+00> : vector<8x32xf32>
    %73 = tpu.matmul %71, %72, %cst_37 {dimension_numbers = #tpu.dot_dimension_numbers<[1], [0], [0], [1], [0, 0, 1, 1], [], []>} : vector<8x64xbf16>, vector<64x32xbf16>, vector<8x32xf32> -> vector<8x32xf32>
    %c0_38 = arith.constant 0 : index
    %c0_39 = arith.constant 0 : index
    %74 = vector.load %arg17[%c0_38, %c0_39] : memref<1x32xf32, #tpu.memory_space<vmem>>, vector<1x32xf32>
    %75 = vector.broadcast %74 : vector<1x32xf32> to vector<8x32xf32>
    %76 = arith.addf %73, %75 : vector<8x32xf32>
    %77 = arith.addf %62, %76 : vector<8x32xf32>
    %cst_40 = arith.constant dense<0.000000e+00> : vector<8xf32>
    %78 = vector.multi_reduction <add>, %77, %cst_40 [1] : vector<8x32xf32> to vector<8xf32>
    %79 = vector.shape_cast %78 : vector<8xf32> to vector<8x1xf32>
    %cst_41 = arith.constant 3.200000e+01 : f32
    %80 = vector.broadcast %cst_41 : f32 to vector<8x1xf32>
    %81 = arith.divf %79, %80 : vector<8x1xf32>
    %82 = vector.broadcast %81 : vector<8x1xf32> to vector<8x32xf32>
    %83 = arith.subf %77, %82 : vector<8x32xf32>
    %84 = arith.mulf %83, %83 : vector<8x32xf32>
    %cst_42 = arith.constant dense<0.000000e+00> : vector<8xf32>
    %85 = vector.multi_reduction <add>, %84, %cst_42 [1] : vector<8x32xf32> to vector<8xf32>
    %86 = vector.shape_cast %85 : vector<8xf32> to vector<8x1xf32>
    %cst_43 = arith.constant 3.200000e+01 : f32
    %87 = vector.broadcast %cst_43 : f32 to vector<8x1xf32>
    %88 = arith.divf %86, %87 : vector<8x1xf32>
    %89 = vector.broadcast %81 : vector<8x1xf32> to vector<8x32xf32>
    %90 = arith.subf %77, %89 : vector<8x32xf32>
    %cst_44 = arith.constant 9.99999974E-6 : f32
    %91 = vector.broadcast %cst_44 : f32 to vector<8x1xf32>
    %92 = arith.addf %88, %91 : vector<8x1xf32>
    %93 = math.rsqrt %92 : vector<8x1xf32>
    %94 = vector.broadcast %93 : vector<8x1xf32> to vector<8x32xf32>
    %95 = arith.mulf %90, %94 : vector<8x32xf32>
    %c0_45 = arith.constant 0 : index
    %c0_46 = arith.constant 0 : index
    %96 = vector.load %arg18[%c0_45, %c0_46] : memref<1x32xf32, #tpu.memory_space<vmem>>, vector<1x32xf32>
    %97 = vector.broadcast %96 : vector<1x32xf32> to vector<8x32xf32>
    %98 = arith.mulf %95, %97 : vector<8x32xf32>
    %c0_47 = arith.constant 0 : index
    %c0_48 = arith.constant 0 : index
    %99 = vector.load %arg19[%c0_47, %c0_48] : memref<1x32xf32, #tpu.memory_space<vmem>>, vector<1x32xf32>
    %100 = vector.broadcast %99 : vector<1x32xf32> to vector<8x32xf32>
    %101 = arith.addf %98, %100 : vector<8x32xf32>
    %c0_49 = arith.constant 0 : index
    %c0_50 = arith.constant 0 : index
    %c0_51 = arith.constant 0 : index
    %102 = vector.load %arg20[%c0_49, %c0_50, %c0_51] : memref<1x8x32xf32, #tpu.memory_space<vmem>>, vector<1x8x32xf32>
    %103 = vector.shape_cast %102 : vector<1x8x32xf32> to vector<8x32xf32>
    %104 = vector.shape_cast %101 : vector<8x32xf32> to vector<1x8x32xf32>
    tpu.vector_store %arg20[%c0_49, %c0_50, %c0_51], %104 {strides = array<i32>} : memref<1x8x32xf32, #tpu.memory_space<vmem>>, vector<1x8x32xf32>,
    return
  }
  func.func @transform_0(%arg0: i32, %arg1: i32) -> (i32, i32, i32) {
    %c0_i32 = arith.constant 0 : i32
    %c0_i32_0 = arith.constant 0 : i32
    return %arg0, %arg1, %c0_i32 : i32, i32, i32
  }
  func.func @transform_1(%arg0: i32, %arg1: i32) -> (i32, i32, i32) {
    %c0_i32 = arith.constant 0 : i32
    %c0_i32_0 = arith.constant 0 : i32
    %c0_i32_1 = arith.constant 0 : i32
    return %arg0, %c0_i32, %c0_i32_0 : i32, i32, i32
  }
  func.func @transform_2(%arg0: i32, %arg1: i32) -> (i32, i32) {
    %c0_i32 = arith.constant 0 : i32
    %c0_i32_0 = arith.constant 0 : i32
    %c0_i32_1 = arith.constant 0 : i32
    return %c0_i32, %c0_i32_0 : i32, i32
  }
  func.func @transform_3(%arg0: i32, %arg1: i32) -> (i32, i32) {
    %c0_i32 = arith.constant 0 : i32
    %c0_i32_0 = arith.constant 0 : i32
    %c0_i32_1 = arith.constant 0 : i32
    return %c0_i32, %c0_i32_0 : i32, i32
  }
  func.func @transform_4(%arg0: i32, %arg1: i32) -> (i32, i32) {
    %c0_i32 = arith.constant 0 : i32
    %c0_i32_0 = arith.constant 0 : i32
    %c0_i32_1 = arith.constant 0 : i32
    return %c0_i32, %c0_i32_0 : i32, i32
  }
  func.func @transform_5(%arg0: i32, %arg1: i32) -> (i32, i32) {
    %c0_i32 = arith.constant 0 : i32
    %c0_i32_0 = arith.constant 0 : i32
    %c0_i32_1 = arith.constant 0 : i32
    return %c0_i32, %c0_i32_0 : i32, i32
  }
  func.func @transform_6(%arg0: i32, %arg1: i32) -> (i32, i32) {
    %c0_i32 = arith.constant 0 : i32
    %c0_i32_0 = arith.constant 0 : i32
    %c0_i32_1 = arith.constant 0 : i32
    return %c0_i32, %c0_i32_0 : i32, i32
  }
  func.func @transform_7(%arg0: i32, %arg1: i32) -> (i32, i32) {
    %c0_i32 = arith.constant 0 : i32
    %c0_i32_0 = arith.constant 0 : i32
    %c0_i32_1 = arith.constant 0 : i32
    return %c0_i32, %c0_i32_0 : i32, i32
  }
  func.func @transform_8(%arg0: i32, %arg1: i32) -> (i32, i32) {
    %c0_i32 = arith.constant 0 : i32
    %c0_i32_0 = arith.constant 0 : i32
    %c0_i32_1 = arith.constant 0 : i32
    return %c0_i32, %c0_i32_0 : i32, i32
  }
  func.func @transform_9(%arg0: i32, %arg1: i32) -> (i32, i32) {
    %c0_i32 = arith.constant 0 : i32
    %c0_i32_0 = arith.constant 0 : i32
    %c0_i32_1 = arith.constant 0 : i32
    return %c0_i32, %c0_i32_0 : i32, i32
  }
  func.func @transform_10(%arg0: i32, %arg1: i32) -> (i32, i32) {
    %c0_i32 = arith.constant 0 : i32
    %c0_i32_0 = arith.constant 0 : i32
    %c0_i32_1 = arith.constant 0 : i32
    return %c0_i32, %c0_i32_0 : i32, i32
  }
  func.func @transform_11(%arg0: i32, %arg1: i32) -> (i32, i32) {
    %c0_i32 = arith.constant 0 : i32
    %c0_i32_0 = arith.constant 0 : i32
    %c0_i32_1 = arith.constant 0 : i32
    return %c0_i32, %c0_i32_0 : i32, i32
  }
  func.func @transform_12(%arg0: i32, %arg1: i32) -> (i32, i32) {
    %c0_i32 = arith.constant 0 : i32
    %c0_i32_0 = arith.constant 0 : i32
    %c0_i32_1 = arith.constant 0 : i32
    return %c0_i32, %c0_i32_0 : i32, i32
  }
  func.func @transform_13(%arg0: i32, %arg1: i32) -> (i32, i32) {
    %c0_i32 = arith.constant 0 : i32
    %c0_i32_0 = arith.constant 0 : i32
    %c0_i32_1 = arith.constant 0 : i32
    return %c0_i32, %c0_i32_0 : i32, i32
  }
  func.func @transform_14(%arg0: i32, %arg1: i32) -> (i32, i32) {
    %c0_i32 = arith.constant 0 : i32
    %c0_i32_0 = arith.constant 0 : i32
    %c0_i32_1 = arith.constant 0 : i32
    return %c0_i32, %c0_i32_0 : i32, i32
  }
  func.func @transform_15(%arg0: i32, %arg1: i32) -> (i32, i32) {
    %c0_i32 = arith.constant 0 : i32
    %c0_i32_0 = arith.constant 0 : i32
    %c0_i32_1 = arith.constant 0 : i32
    return %c0_i32, %c0_i32_0 : i32, i32
  }
  func.func @transform_16(%arg0: i32, %arg1: i32) -> (i32, i32) {
    %c0_i32 = arith.constant 0 : i32
    %c0_i32_0 = arith.constant 0 : i32
    %c0_i32_1 = arith.constant 0 : i32
    return %c0_i32, %c0_i32_0 : i32, i32
  }
  func.func @transform_17(%arg0: i32, %arg1: i32) -> (i32, i32) {
    %c0_i32 = arith.constant 0 : i32
    %c0_i32_0 = arith.constant 0 : i32
    %c0_i32_1 = arith.constant 0 : i32
    return %c0_i32, %c0_i32_0 : i32, i32
  }
  func.func @transform_18(%arg0: i32, %arg1: i32) -> (i32, i32, i32) {
    %c0_i32 = arith.constant 0 : i32
    %c0_i32_0 = arith.constant 0 : i32
    return %arg0, %arg1, %c0_i32 : i32, i32, i32
  }
}

</mosaic_0001>

<llo_original>
// kernel: tpu_custom_call.1
$region0: #{tpu_custom_call.1}
  #allocation0 [shape = 'u32[]', space=smem, size = 0x4, offset = 0x4, fixed_abs, tag = 'smem constant byte address 0x4 - core index']
  #allocation1 [shape = 'u32[144,128]{1,0:T(1,128)}', space=vmem, size = 0x12000, scoped, tag = 'internal scratch']
  #allocation2 [shape = 'bf16[4,8,8]{2,1,0:T(8,128)(2,1)}', space=vmem, size = 0x2000, scoped, tag = 'scratch operand']
  #allocation3 [shape = 'bf16[4,8,8]{2,1,0:T(8,128)(2,1)}', space=vmem, size = 0x2000, scoped, tag = 'scratch operand']
  %s0 = inlined_call_operand.hbm [shape: f32[2,8,32], index: 0, kind: input, shape index: {}]
  %s1 = inlined_call_operand.hbm [shape: f32[2,8,32], index: 1, kind: input, shape index: {}]
  %s2 = inlined_call_operand.hbm [shape: bf16[32,32], index: 2, kind: input, shape index: {}]
  %s3 = inlined_call_operand.hbm [shape: f32[1,32], index: 3, kind: input, shape index: {}]
  %s4 = inlined_call_operand.hbm [shape: bf16[32,32], index: 4, kind: input, shape index: {}]
  %s5 = inlined_call_operand.hbm [shape: f32[1,32], index: 5, kind: input, shape index: {}]
  %s6 = inlined_call_operand.hbm [shape: bf16[32,32], index: 6, kind: input, shape index: {}]
  %s7 = inlined_call_operand.hbm [shape: f32[1,32], index: 7, kind: input, shape index: {}]
  %s8 = inlined_call_operand.hbm [shape: bf16[32,32], index: 8, kind: input, shape index: {}]
  %s9 = inlined_call_operand.hbm [shape: f32[1,32], index: 9, kind: input, shape index: {}]
  %s10 = inlined_call_operand.hbm [shape: f32[1,32], index: 10, kind: input, shape index: {}]
  %s11 = inlined_call_operand.hbm [shape: f32[1,32], index: 11, kind: input, shape index: {}]
  %s12 = inlined_call_operand.hbm [shape: bf16[32,64], index: 12, kind: input, shape index: {}]
  %s13 = inlined_call_operand.hbm [shape: f32[1,64], index: 13, kind: input, shape index: {}]
  %s14 = inlined_call_operand.hbm [shape: bf16[64,32], index: 14, kind: input, shape index: {}]
  %s15 = inlined_call_operand.hbm [shape: f32[1,32], index: 15, kind: input, shape index: {}]
  %s16 = inlined_call_operand.hbm [shape: f32[1,32], index: 16, kind: input, shape index: {}]
  %s17 = inlined_call_operand.hbm [shape: f32[1,32], index: 17, kind: input, shape index: {}]
  %s18 = inlined_call_operand.hbm [shape: f32[2,8,32], index: 18, kind: output, shape index: {}]
  %s19 = sld [smem:[#allocation0]]
  $region188: #{tpu_custom_call.1} parent=0
    _
  %s21 = ssub.s32 1, %s19
  %s22 = scalar_select 0, %s21, %s19
  $region1: #{tpu_custom_call.1} parent=0
    #allocation4 [shape = 'u8[8192]{0}', space=vmem, size = 0x2000, scoped, tag = 'input window, operand 0']
    #allocation5 [shape = 's32[2]{0}', space=sflag, size = 0x8, scoped, tag = 'scoped memory for tpu_custom_call.1']
    #allocation6 [shape = 's32[2]{0}', space=sflag, size = 0x8, scoped, tag = 'scoped memory for tpu_custom_call.1']
    #allocation7 [shape = 'u8[8192]{0}', space=vmem, size = 0x2000, scoped, tag = 'input window, operand 1']
    #allocation8 [shape = 's32[2]{0}', space=sflag, size = 0x8, scoped, tag = 'scoped memory for tpu_custom_call.1']
    #allocation9 [shape = 'u8[8192]{0}', space=vmem, size = 0x2000, scoped, tag = 'input window, operand 2, single buffered']
    #allocation10 [shape = 'u8[512]{0}', space=vmem, size = 0x400, scoped, tag = 'input window, operand 3, single buffered']
    #allocation11 [shape = 's32[1]{0}', space=sflag, size = 0x4, scoped, tag = 'scoped memory for tpu_custom_call.1']
    #allocation12 [shape = 'u8[8192]{0}', space=vmem, size = 0x2000, scoped, tag = 'input window, operand 4, single buffered']
    #allocation13 [shape = 'u8[512]{0}', space=vmem, size = 0x400, scoped, tag = 'input window, operand 5, single buffered']
    #allocation14 [shape = 's32[1]{0}', space=sflag, size = 0x4, scoped, tag = 'scoped memory for tpu_custom_call.1']
    #allocation15 [shape = 'u8[8192]{0}', space=vmem, size = 0x2000, scoped, tag = 'input window, operand 6, single buffered']
    #allocation16 [shape = 'u8[512]{0}', space=vmem, size = 0x400, scoped, tag = 'input window, operand 7, single buffered']
    #allocation17 [shape = 's32[1]{0}', space=sflag, size = 0x4, scoped, tag = 'scoped memory for tpu_custom_call.1']
    #allocation18 [shape = 'u8[8192]{0}', space=vmem, size = 0x2000, scoped, tag = 'input window, operand 8, single buffered']
    #allocation19 [shape = 'u8[512]{0}', space=vmem, size = 0x400, scoped, tag = 'input window, operand 9, single buffered']
    #allocation20 [shape = 's32[1]{0}', space=sflag, size = 0x4, scoped, tag = 'scoped memory for tpu_custom_call.1']
    #allocation21 [shape = 'u8[512]{0}', space=vmem, size = 0x400, scoped, tag = 'input window, operand 10, single buffered']
    #allocation22 [shape = 'u8[512]{0}', space=vmem, size = 0x400, scoped, tag = 'input window, operand 11, single buffered']
    #allocation23 [shape = 's32[1]{0}', space=sflag, size = 0x4, scoped, tag = 'scoped memory for tpu_custom_call.1']
    #allocation24 [shape = 'u8[8192]{0}', space=vmem, size = 0x2000, scoped, tag = 'input window, operand 12, single buffered']
    #allocation25 [shape = 'u8[512]{0}', space=vmem, size = 0x400, scoped, tag = 'input window, operand 13, single buffered']
    #allocation26 [shape = 's32[1]{0}', space=sflag, size = 0x4, scoped, tag = 'scoped memory for tpu_custom_call.1']
    #allocation27 [shape = 'u8[16384]{0}', space=vmem, size = 0x4000, scoped, tag = 'input window, operand 14, single buffered']
    #allocation28 [shape = 'u8[512]{0}', space=vmem, size = 0x400, scoped, tag = 'input window, operand 15, single buffered']
    #allocation29 [shape = 's32[1]{0}', space=sflag, size = 0x4, scoped, tag = 'scoped memory for tpu_custom_call.1']
    #allocation30 [shape = 'u8[512]{0}', space=vmem, size = 0x400, scoped, tag = 'input window, operand 16, single buffered']
    #allocation31 [shape = 'u8[512]{0}', space=vmem, size = 0x400, scoped, tag = 'input window, operand 17, single buffered']
    #allocation32 [shape = 's32[1]{0}', space=sflag, size = 0x4, scoped, tag = 'scoped memory for tpu_custom_call.1']
    #allocation33 [shape = 'u8[8192]{0}', space=vmem, size = 0x2000, scoped, tag = 'output window, operand 0']
    %23 = vsyncpa [#allocation5], 0
    %s24 = scalar_lea.sflag [#allocation5], 1
    %25 = vsyncpa %s24, 0
    %26 = vsyncpa [#allocation8], 0
    %s27 = scalar_lea.sflag [#allocation8], 1
    %28 = vsyncpa %s27, 0
    %29 = vsyncpa [#allocation11], 0
    %30 = vsyncpa [#allocation14], 0
    %31 = vsyncpa [#allocation17], 0
    %32 = vsyncpa [#allocation20], 0
    %33 = vsyncpa [#allocation23], 0
    %34 = vsyncpa [#allocation26], 0
    %35 = vsyncpa [#allocation29], 0
    %36 = vsyncpa [#allocation32], 0
    %37 = vsyncpa [#allocation6], 0
    %s38 = scalar_lea.sflag [#allocation6], 1
    %39 = vsyncpa %s38, 0
    loop: start=0, step=1, limit=4
    $region2: #{tpu_custom_call.1} parent=1 // loop_pre_header
      _
    $region3: #{tpu_custom_call.1} parent=1 // loop_header
      %s41 = sphi 0, %s45
      %p42 = scmp.ge.s32.totalorder %s41, 4
      %s48 = sphi 0, %s60
      %s49 = sphi 0, %s56
      %s50 = sphi 0, %s48
      %s51 = sphi 0, %s49
      %s52 = sphi 0, %s50
      %s53 = sphi 0, %s51
      %s65 = sphi 0, %s67
      %s68 = sphi 0, %s65
      %s69 = sphi 0, %s68
      %s85 = sphi 0, %s69
      %s91 = sphi 0, %s93
      %s94 = sphi 0, %s91
      %s95 = sphi 0, %s94
      %s111 = sphi 0, %s95
      %s115 = sphi 0, %s115
      %s117 = sphi 0, %s115
      %s118 = sphi 0, %s117
      %s132 = sphi 0, %s118
      %s136 = sphi 0, %s136
      %s138 = sphi 0, %s136
      %s139 = sphi 0, %s138
      %s153 = sphi 0, %s139
      %s157 = sphi 0, %s157
      %s159 = sphi 0, %s157
      %s160 = sphi 0, %s159
      %s174 = sphi 0, %s160
      %s178 = sphi 0, %s178
      %s180 = sphi 0, %s178
      %s181 = sphi 0, %s180
      %s195 = sphi 0, %s181
      %s199 = sphi 0, %s199
      %s201 = sphi 0, %s199
      %s202 = sphi 0, %s201
      %s216 = sphi 0, %s202
      %s220 = sphi 0, %s220
      %s222 = sphi 0, %s220
      %s223 = sphi 0, %s222
      %s237 = sphi 0, %s223
      %s241 = sphi 0, %s241
      %s243 = sphi 0, %s241
      %s244 = sphi 0, %s243
      %s258 = sphi 0, %s244
      %s262 = sphi 0, %s262
      %s264 = sphi 0, %s262
      %s265 = sphi 0, %s264
      %s279 = sphi 0, %s265
      %s283 = sphi 0, %s283
      %s285 = sphi 0, %s283
      %s286 = sphi 0, %s285
      %s300 = sphi 0, %s286
      %s304 = sphi 0, %s304
      %s306 = sphi 0, %s304
      %s307 = sphi 0, %s306
      %s321 = sphi 0, %s307
      %s325 = sphi 0, %s325
      %s327 = sphi 0, %s325
      %s328 = sphi 0, %s327
      %s342 = sphi 0, %s328
      %s346 = sphi 0, %s346
      %s348 = sphi 0, %s346
      %s349 = sphi 0, %s348
      %s363 = sphi 0, %s349
      %s367 = sphi 0, %s367
      %s369 = sphi 0, %s367
      %s370 = sphi 0, %s369
      %s384 = sphi 0, %s370
      %s388 = sphi 0, %s388
      %s390 = sphi 0, %s388
      %s391 = sphi 0, %s390
      %s405 = sphi 0, %s391
      %s409 = sphi 0, %s409
      %s411 = sphi 0, %s409
      %s412 = sphi 0, %s411
      %s426 = sphi 0, %s412
      %s430 = sphi 0, %s430
      %s432 = sphi 0, %s430
      %s433 = sphi 0, %s432
      %s447 = sphi 0, %s433
      %s455 = sphi 0, %s457
      %s458 = sphi 0, %s455
      %s459 = sphi 0, %s458
      %s475 = sphi 0, %s459
    $region4: #{tpu_custom_call.1} parent=1 // loop_header_branch
      %44 = sbr.rel (%p42) target = $region8
    $region5: #{tpu_custom_call.1} parent=1 // loop_body
      %s46 = ssub.s32 %s41, 1
      %s47 = ssub.s32 %s41, 2
      %s54 = sadd.s32 1, %s49
      %p55 = scmp.ge.s32.totalorder %s54, 1
      %s56 = scalar_select %p55, 0, %s54
      %s57 = sadd.s32 1, %s48
      %s58 = scalar_select %p55, %s57, %s48
      %p59 = scmp.ge.s32.totalorder %s58, 2
      %s60 = scalar_select %p59, 0, %s58
      %s61 = ssub.s32 %s48, %s60
      %s62 = ssub.s32 %s49, %s56
      %s63 = sor.u32 %s61, %s62
      %p64 = scmp.eq.s32.totalorder %s63, 0
      %s66 = sadd.s32 %s65, 1
      %s67 = scalar_select %p64, %s65, %s66
      %p70 = pneg %p64
      %p71 = scmp.eq.s32.totalorder %s41, 1
      %p72 = por %p70, %p71
      %p73 = scmp.ne.s32.totalorder %s65, %s68
      %p74 = scmp.eq.s32.totalorder %s41, 0
      %p75 = por %p73, %p74
      %p76 = scmp.ne.s32.totalorder %s65, %s68
      %p77 = scmp.eq.s32.totalorder %s46, 1
      %p78 = por %p76, %p77
      %p79 = scmp.ne.s32.totalorder %s68, %s69
      %p80 = scmp.eq.s32.totalorder %s46, 0
      %p81 = por %p79, %p80
      %p82 = scmp.ne.s32.totalorder %s68, %s69
      %p83 = scmp.eq.s32.totalorder %s47, 1
      %p84 = por %p82, %p83
      %p86 = scmp.ne.s32.totalorder %s69, %s85
      %p87 = scmp.eq.s32.totalorder %s47, 0
      %p88 = por %p86, %p87
      %s89 = ssub.s32 %s48, %s60
      %p90 = scmp.eq.s32.totalorder %s89, 0
      %s92 = sadd.s32 %s91, 1
      %s93 = scalar_select %p90, %s91, %s92
      %p96 = pneg %p90
      %p97 = scmp.eq.s32.totalorder %s41, 1
      %p98 = por %p96, %p97
      %p99 = scmp.ne.s32.totalorder %s91, %s94
      %p100 = scmp.eq.s32.totalorder %s41, 0
      %p101 = por %p99, %p100
      %p102 = scmp.ne.s32.totalorder %s91, %s94
      %p103 = scmp.eq.s32.totalorder %s46, 1
      %p104 = por %p102, %p103
      %p105 = scmp.ne.s32.totalorder %s94, %s95
      %p106 = scmp.eq.s32.totalorder %s46, 0
      %p107 = por %p105, %p106
      %p108 = scmp.ne.s32.totalorder %s94, %s95
      %p109 = scmp.eq.s32.totalorder %s47, 1
      %p110 = por %p108, %p109
      %p112 = scmp.ne.s32.totalorder %s95, %s111
      %p113 = scmp.eq.s32.totalorder %s47, 0
      %p114 = por %p112, %p113
      %s116 = sadd.s32 %s115, 1
      %p119 = scmp.eq.s32.totalorder %s41, 1
      %p120 = scmp.ne.s32.totalorder %s115, %s117
      %p121 = scmp.eq.s32.totalorder %s41, 0
      %p122 = por %p120, %p121
      %p123 = scmp.ne.s32.totalorder %s115, %s117
      %p124 = scmp.eq.s32.totalorder %s46, 1
      %p125 = por %p123, %p124
      %p126 = scmp.ne.s32.totalorder %s117, %s118
      %p127 = scmp.eq.s32.totalorder %s46, 0
      %p128 = por %p126, %p127
      %p129 = scmp.ne.s32.totalorder %s117, %s118
      %p130 = scmp.eq.s32.totalorder %s47, 1
      %p131 = por %p129, %p130
      %p133 = scmp.ne.s32.totalorder %s118, %s132
      %p134 = scmp.eq.s32.totalorder %s47, 0
      %p135 = por %p133, %p134
      %s137 = sadd.s32 %s136, 1
      %p140 = scmp.eq.s32.totalorder %s41, 1
      %p141 = scmp.ne.s32.totalorder %s136, %s138
      %p142 = scmp.eq.s32.totalorder %s41, 0
      %p143 = por %p141, %p142
      %p144 = scmp.ne.s32.totalorder %s136, %s138
      %p145 = scmp.eq.s32.totalorder %s46, 1
      %p146 = por %p144, %p145
      %p147 = scmp.ne.s32.totalorder %s138, %s139
      %p148 = scmp.eq.s32.totalorder %s46, 0
      %p149 = por %p147, %p148
      %p150 = scmp.ne.s32.totalorder %s138, %s139
      %p151 = scmp.eq.s32.totalorder %s47, 1
      %p152 = por %p150, %p151
      %p154 = scmp.ne.s32.totalorder %s139, %s153
      %p155 = scmp.eq.s32.totalorder %s47, 0
      %p156 = por %p154, %p155
      %s158 = sadd.s32 %s157, 1
      %p161 = scmp.eq.s32.totalorder %s41, 1
      %p162 = scmp.ne.s32.totalorder %s157, %s159
      %p163 = scmp.eq.s32.totalorder %s41, 0
      %p164 = por %p162, %p163
      %p165 = scmp.ne.s32.totalorder %s157, %s159
      %p166 = scmp.eq.s32.totalorder %s46, 1
      %p167 = por %p165, %p166
      %p168 = scmp.ne.s32.totalorder %s159, %s160
      %p169 = scmp.eq.s32.totalorder %s46, 0
      %p170 = por %p168, %p169
      %p171 = scmp.ne.s32.totalorder %s159, %s160
      %p172 = scmp.eq.s32.totalorder %s47, 1
      %p173 = por %p171, %p172
      %p175 = scmp.ne.s32.totalorder %s160, %s174
      %p176 = scmp.eq.s32.totalorder %s47, 0
      %p177 = por %p175, %p176
      %s179 = sadd.s32 %s178, 1
      %p182 = scmp.eq.s32.totalorder %s41, 1
      %p183 = scmp.ne.s32.totalorder %s178, %s180
      %p184 = scmp.eq.s32.totalorder %s41, 0
      %p185 = por %p183, %p184
      %p186 = scmp.ne.s32.totalorder %s178, %s180
      %p187 = scmp.eq.s32.totalorder %s46, 1
      %p188 = por %p186, %p187
      %p189 = scmp.ne.s32.totalorder %s180, %s181
      %p190 = scmp.eq.s32.totalorder %s46, 0
      %p191 = por %p189, %p190
      %p192 = scmp.ne.s32.totalorder %s180, %s181
      %p193 = scmp.eq.s32.totalorder %s47, 1
      %p194 = por %p192, %p193
      %p196 = scmp.ne.s32.totalorder %s181, %s195
      %p197 = scmp.eq.s32.totalorder %s47, 0
      %p198 = por %p196, %p197
      %s200 = sadd.s32 %s199, 1
      %p203 = scmp.eq.s32.totalorder %s41, 1
      %p204 = scmp.ne.s32.totalorder %s199, %s201
      %p205 = scmp.eq.s32.totalorder %s41, 0
      %p206 = por %p204, %p205
      %p207 = scmp.ne.s32.totalorder %s199, %s201
      %p208 = scmp.eq.s32.totalorder %s46, 1
      %p209 = por %p207, %p208
      %p210 = scmp.ne.s32.totalorder %s201, %s202
      %p211 = scmp.eq.s32.totalorder %s46, 0
      %p212 = por %p210, %p211
      %p213 = scmp.ne.s32.totalorder %s201, %s202
      %p214 = scmp.eq.s32.totalorder %s47, 1
      %p215 = por %p213, %p214
      %p217 = scmp.ne.s32.totalorder %s202, %s216
      %p218 = scmp.eq.s32.totalorder %s47, 0
      %p219 = por %p217, %p218
      %s221 = sadd.s32 %s220, 1
      %p224 = scmp.eq.s32.totalorder %s41, 1
      %p225 = scmp.ne.s32.totalorder %s220, %s222
      %p226 = scmp.eq.s32.totalorder %s41, 0
      %p227 = por %p225, %p226
      %p228 = scmp.ne.s32.totalorder %s220, %s222
      %p229 = scmp.eq.s32.totalorder %s46, 1
      %p230 = por %p228, %p229
      %p231 = scmp.ne.s32.totalorder %s222, %s223
      %p232 = scmp.eq.s32.totalorder %s46, 0
      %p233 = por %p231, %p232
      %p234 = scmp.ne.s32.totalorder %s222, %s223
      %p235 = scmp.eq.s32.totalorder %s47, 1
      %p236 = por %p234, %p235
      %p238 = scmp.ne.s32.totalorder %s223, %s237
      %p239 = scmp.eq.s32.totalorder %s47, 0
      %p240 = por %p238, %p239
      %s242 = sadd.s32 %s241, 1
      %p245 = scmp.eq.s32.totalorder %s41, 1
      %p246 = scmp.ne.s32.totalorder %s241, %s243
      %p247 = scmp.eq.s32.totalorder %s41, 0
      %p248 = por %p246, %p247
      %p249 = scmp.ne.s32.totalorder %s241, %s243
      %p250 = scmp.eq.s32.totalorder %s46, 1
      %p251 = por %p249, %p250
      %p252 = scmp.ne.s32.totalorder %s243, %s244
      %p253 = scmp.eq.s32.totalorder %s46, 0
      %p254 = por %p252, %p253
      %p255 = scmp.ne.s32.totalorder %s243, %s244
      %p256 = scmp.eq.s32.totalorder %s47, 1
      %p257 = por %p255, %p256
      %p259 = scmp.ne.s32.totalorder %s244, %s258
      %p260 = scmp.eq.s32.totalorder %s47, 0
      %p261 = por %p259, %p260
      %s263 = sadd.s32 %s262, 1
      %p266 = scmp.eq.s32.totalorder %s41, 1
      %p267 = scmp.ne.s32.totalorder %s262, %s264
      %p268 = scmp.eq.s32.totalorder %s41, 0
      %p269 = por %p267, %p268
      %p270 = scmp.ne.s32.totalorder %s262, %s264
      %p271 = scmp.eq.s32.totalorder %s46, 1
      %p272 = por %p270, %p271
      %p273 = scmp.ne.s32.totalorder %s264, %s265
      %p274 = scmp.eq.s32.totalorder %s46, 0
      %p275 = por %p273, %p274
      %p276 = scmp.ne.s32.totalorder %s264, %s265
      %p277 = scmp.eq.s32.totalorder %s47, 1
      %p278 = por %p276, %p277
      %p280 = scmp.ne.s32.totalorder %s265, %s279
      %p281 = scmp.eq.s32.totalorder %s47, 0
      %p282 = por %p280, %p281
      %s284 = sadd.s32 %s283, 1
      %p287 = scmp.eq.s32.totalorder %s41, 1
      %p288 = scmp.ne.s32.totalorder %s283, %s285
      %p289 = scmp.eq.s32.totalorder %s41, 0
      %p290 = por %p288, %p289
      %p291 = scmp.ne.s32.totalorder %s283, %s285
      %p292 = scmp.eq.s32.totalorder %s46, 1
      %p293 = por %p291, %p292
      %p294 = scmp.ne.s32.totalorder %s285, %s286
      %p295 = scmp.eq.s32.totalorder %s46, 0
      %p296 = por %p294, %p295
      %p297 = scmp.ne.s32.totalorder %s285, %s286
      %p298 = scmp.eq.s32.totalorder %s47, 1
      %p299 = por %p297, %p298
      %p301 = scmp.ne.s32.totalorder %s286, %s300
      %p302 = scmp.eq.s32.totalorder %s47, 0
      %p303 = por %p301, %p302
      %s305 = sadd.s32 %s304, 1
      %p308 = scmp.eq.s32.totalorder %s41, 1
      %p309 = scmp.ne.s32.totalorder %s304, %s306
      %p310 = scmp.eq.s32.totalorder %s41, 0
      %p311 = por %p309, %p310
      %p312 = scmp.ne.s32.totalorder %s304, %s306
      %p313 = scmp.eq.s32.totalorder %s46, 1
      %p314 = por %p312, %p313
      %p315 = scmp.ne.s32.totalorder %s306, %s307
      %p316 = scmp.eq.s32.totalorder %s46, 0
      %p317 = por %p315, %p316
      %p318 = scmp.ne.s32.totalorder %s306, %s307
      %p319 = scmp.eq.s32.totalorder %s47, 1
      %p320 = por %p318, %p319
      %p322 = scmp.ne.s32.totalorder %s307, %s321
      %p323 = scmp.eq.s32.totalorder %s47, 0
      %p324 = por %p322, %p323
      %s326 = sadd.s32 %s325, 1
      %p329 = scmp.eq.s32.totalorder %s41, 1
      %p330 = scmp.ne.s32.totalorder %s325, %s327
      %p331 = scmp.eq.s32.totalorder %s41, 0
      %p332 = por %p330, %p331
      %p333 = scmp.ne.s32.totalorder %s325, %s327
      %p334 = scmp.eq.s32.totalorder %s46, 1
      %p335 = por %p333, %p334
      %p336 = scmp.ne.s32.totalorder %s327, %s328
      %p337 = scmp.eq.s32.totalorder %s46, 0
      %p338 = por %p336, %p337
      %p339 = scmp.ne.s32.totalorder %s327, %s328
      %p340 = scmp.eq.s32.totalorder %s47, 1
      %p341 = por %p339, %p340
      %p343 = scmp.ne.s32.totalorder %s328, %s342
      %p344 = scmp.eq.s32.totalorder %s47, 0
      %p345 = por %p343, %p344
      %s347 = sadd.s32 %s346, 1
      %p350 = scmp.eq.s32.totalorder %s41, 1
      %p351 = scmp.ne.s32.totalorder %s346, %s348
      %p352 = scmp.eq.s32.totalorder %s41, 0
      %p353 = por %p351, %p352
      %p354 = scmp.ne.s32.totalorder %s346, %s348
      %p355 = scmp.eq.s32.totalorder %s46, 1
      %p356 = por %p354, %p355
      %p357 = scmp.ne.s32.totalorder %s348, %s349
      %p358 = scmp.eq.s32.totalorder %s46, 0
      %p359 = por %p357, %p358
      %p360 = scmp.ne.s32.totalorder %s348, %s349
      %p361 = scmp.eq.s32.totalorder %s47, 1
      %p362 = por %p360, %p361
      %p364 = scmp.ne.s32.totalorder %s349, %s363
      %p365 = scmp.eq.s32.totalorder %s47, 0
      %p366 = por %p364, %p365
      %s368 = sadd.s32 %s367, 1
      %p371 = scmp.eq.s32.totalorder %s41, 1
      %p372 = scmp.ne.s32.totalorder %s367, %s369
      %p373 = scmp.eq.s32.totalorder %s41, 0
      %p374 = por %p372, %p373
      %p375 = scmp.ne.s32.totalorder %s367, %s369
      %p376 = scmp.eq.s32.totalorder %s46, 1
      %p377 = por %p375, %p376
      %p378 = scmp.ne.s32.totalorder %s369, %s370
      %p379 = scmp.eq.s32.totalorder %s46, 0
      %p380 = por %p378, %p379
      %p381 = scmp.ne.s32.totalorder %s369, %s370
      %p382 = scmp.eq.s32.totalorder %s47, 1
      %p383 = por %p381, %p382
      %p385 = scmp.ne.s32.totalorder %s370, %s384
      %p386 = scmp.eq.s32.totalorder %s47, 0
      %p387 = por %p385, %p386
      %s389 = sadd.s32 %s388, 1
      %p392 = scmp.eq.s32.totalorder %s41, 1
      %p393 = scmp.ne.s32.totalorder %s388, %s390
      %p394 = scmp.eq.s32.totalorder %s41, 0
      %p395 = por %p393, %p394
      %p396 = scmp.ne.s32.totalorder %s388, %s390
      %p397 = scmp.eq.s32.totalorder %s46, 1
      %p398 = por %p396, %p397
      %p399 = scmp.ne.s32.totalorder %s390, %s391
      %p400 = scmp.eq.s32.totalorder %s46, 0
      %p401 = por %p399, %p400
      %p402 = scmp.ne.s32.totalorder %s390, %s391
      %p403 = scmp.eq.s32.totalorder %s47, 1
      %p404 = por %p402, %p403
      %p406 = scmp.ne.s32.totalorder %s391, %s405
      %p407 = scmp.eq.s32.totalorder %s47, 0
      %p408 = por %p406, %p407
      %s410 = sadd.s32 %s409, 1
      %p413 = scmp.eq.s32.totalorder %s41, 1
      %p414 = scmp.ne.s32.totalorder %s409, %s411
      %p415 = scmp.eq.s32.totalorder %s41, 0
      %p416 = por %p414, %p415
      %p417 = scmp.ne.s32.totalorder %s409, %s411
      %p418 = scmp.eq.s32.totalorder %s46, 1
      %p419 = por %p417, %p418
      %p420 = scmp.ne.s32.totalorder %s411, %s412
      %p421 = scmp.eq.s32.totalorder %s46, 0
      %p422 = por %p420, %p421
      %p423 = scmp.ne.s32.totalorder %s411, %s412
      %p424 = scmp.eq.s32.totalorder %s47, 1
      %p425 = por %p423, %p424
      %p427 = scmp.ne.s32.totalorder %s412, %s426
      %p428 = scmp.eq.s32.totalorder %s47, 0
      %p429 = por %p427, %p428
      %s431 = sadd.s32 %s430, 1
      %p434 = scmp.eq.s32.totalorder %s41, 1
      %p435 = scmp.ne.s32.totalorder %s430, %s432
      %p436 = scmp.eq.s32.totalorder %s41, 0
      %p437 = por %p435, %p436
      %p438 = scmp.ne.s32.totalorder %s430, %s432
      %p439 = scmp.eq.s32.totalorder %s46, 1
      %p440 = por %p438, %p439
      %p441 = scmp.ne.s32.totalorder %s432, %s433
      %p442 = scmp.eq.s32.totalorder %s46, 0
      %p443 = por %p441, %p442
      %p444 = scmp.ne.s32.totalorder %s432, %s433
      %p445 = scmp.eq.s32.totalorder %s47, 1
      %p446 = por %p444, %p445
      %p448 = scmp.ne.s32.totalorder %s433, %s447
      %p449 = scmp.eq.s32.totalorder %s47, 0
      %p450 = por %p448, %p449
      %s451 = ssub.s32 %s48, %s60
      %s452 = ssub.s32 %s49, %s56
      %s453 = sor.u32 %s451, %s452
      %p454 = scmp.eq.s32.totalorder %s453, 0
      %s456 = sadd.s32 %s455, 1
      %s457 = scalar_select %p454, %s455, %s456
      %p460 = pneg %p454
      %p461 = scmp.eq.s32.totalorder %s41, 1
      %p462 = por %p460, %p461
      %p463 = scmp.ne.s32.totalorder %s455, %s458
      %p464 = scmp.eq.s32.totalorder %s41, 0
      %p465 = por %p463, %p464
      %p466 = scmp.ne.s32.totalorder %s455, %s458
      %p467 = scmp.eq.s32.totalorder %s46, 1
      %p468 = por %p466, %p467
      %p469 = scmp.ne.s32.totalorder %s458, %s459
      %p470 = scmp.eq.s32.totalorder %s46, 0
      %p471 = por %p469, %p470
      %p472 = scmp.ne.s32.totalorder %s458, %s459
      %p473 = scmp.eq.s32.totalorder %s47, 1
      %p474 = por %p472, %p473
      %p476 = scmp.ne.s32.totalorder %s459, %s475
      %p477 = scmp.eq.s32.totalorder %s47, 0
      %p478 = por %p476, %p477
      %p479 = scmp.le.s32.totalorder 1, %s41
      %p480 = scmp.lt.s32.totalorder %s41, 3
      %p481 = pnand %p479, %p480
      %p482 = pneg %p481
      // Predicated region
      $region9: #{tpu_custom_call.1} parent=5 // pred_check
        _
      $region10: #{tpu_custom_call.1} parent=5 // pred_check_branch
        %484 = sbr.rel (%p481) target = $region12
      $region11: #{tpu_custom_call.1} parent=5 // pred_region
        %s485 = ssub.s32 %s41, 1
        // Predicated region
        $region13: #{tpu_custom_call.1} parent=11 // pred_check
          %p486 = pneg %p128
        $region14: #{tpu_custom_call.1} parent=11 // pred_check_branch
          %488 = sbr.rel (%p486) target = $region16
        $region15: #{tpu_custom_call.1} parent=11 // pred_region
          %s490 = ssub.s32 256, 256
          %491 = vsyncadd [#allocation8], %s490
          %s492 = sshll.u32 [#allocation9], 4
          %s493 = int_to_ptr.vmem [resolvable:$true] %s492
          %498 = dma.hbm_to_vmem [thread:$0]  %s2, 256, %s493, [#allocation8], 64, 64, 4
        $region16: #{tpu_custom_call.1} parent=11 // pred_fallthru
          _
        // Predicated region
        $region17: #{tpu_custom_call.1} parent=11 // pred_check
          %p499 = pneg %p149
        $region18: #{tpu_custom_call.1} parent=11 // pred_check_branch
          %501 = sbr.rel (%p499) target = $region20
        $region19: #{tpu_custom_call.1} parent=11 // pred_region
          %s503 = ssub.s32 16, 16
          %504 = vsyncadd [#allocation11], %s503
          %s506 = sshll.u32 [#allocation10], 4
          %s507 = int_to_ptr.vmem [resolvable:$true] %s506
          %509 = dma.hbm_to_vmem [thread:$0]  %s3, 16, %s507, [#allocation11]
        $region20: #{tpu_custom_call.1} parent=11 // pred_fallthru
          _
        // Predicated region
        $region21: #{tpu_custom_call.1} parent=11 // pred_check
          %p510 = pneg %p170
        $region22: #{tpu_custom_call.1} parent=11 // pred_check_branch
          %512 = sbr.rel (%p510) target = $region24
        $region23: #{tpu_custom_call.1} parent=11 // pred_region
          %s514 = ssub.s32 256, 256
          %515 = vsyncadd [#allocation11], %s514
          %s516 = sshll.u32 [#allocation12], 4
          %s517 = int_to_ptr.vmem [resolvable:$true] %s516
          %522 = dma.hbm_to_vmem [thread:$0]  %s4, 256, %s517, [#allocation11], 64, 64, 4
        $region24: #{tpu_custom_call.1} parent=11 // pred_fallthru
          _
        // Predicated region
        $region25: #{tpu_custom_call.1} parent=11 // pred_check
          %p523 = pneg %p191
        $region26: #{tpu_custom_call.1} parent=11 // pred_check_branch
          %525 = sbr.rel (%p523) target = $region28
        $region27: #{tpu_custom_call.1} parent=11 // pred_region
          %s527 = ssub.s32 16, 16
          %528 = vsyncadd [#allocation14], %s527
          %s530 = sshll.u32 [#allocation13], 4
          %s531 = int_to_ptr.vmem [resolvable:$true] %s530
          %533 = dma.hbm_to_vmem [thread:$0]  %s5, 16, %s531, [#allocation14]
        $region28: #{tpu_custom_call.1} parent=11 // pred_fallthru
          _
        // Predicated region
        $region29: #{tpu_custom_call.1} parent=11 // pred_check
          %p534 = pneg %p212
        $region30: #{tpu_custom_call.1} parent=11 // pred_check_branch
          %536 = sbr.rel (%p534) target = $region32
        $region31: #{tpu_custom_call.1} parent=11 // pred_region
          %s538 = ssub.s32 256, 256
          %539 = vsyncadd [#allocation14], %s538
          %s540 = sshll.u32 [#allocation15], 4
          %s541 = int_to_ptr.vmem [resolvable:$true] %s540
          %546 = dma.hbm_to_vmem [thread:$0]  %s6, 256, %s541, [#allocation14], 64, 64, 4
        $region32: #{tpu_custom_call.1} parent=11 // pred_fallthru
          _
        // Predicated region
        $region33: #{tpu_custom_call.1} parent=11 // pred_check
          %p547 = pneg %p233
        $region34: #{tpu_custom_call.1} parent=11 // pred_check_branch
          %549 = sbr.rel (%p547) target = $region36
        $region35: #{tpu_custom_call.1} parent=11 // pred_region
          %s551 = ssub.s32 16, 16
          %552 = vsyncadd [#allocation17], %s551
          %s554 = sshll.u32 [#allocation16], 4
          %s555 = int_to_ptr.vmem [resolvable:$true] %s554
          %557 = dma.hbm_to_vmem [thread:$0]  %s7, 16, %s555, [#allocation17]
        $region36: #{tpu_custom_call.1} parent=11 // pred_fallthru
          _
        // Predicated region
        $region37: #{tpu_custom_call.1} parent=11 // pred_check
          %p558 = pneg %p254
        $region38: #{tpu_custom_call.1} parent=11 // pred_check_branch
          %560 = sbr.rel (%p558) target = $region40
        $region39: #{tpu_custom_call.1} parent=11 // pred_region
          %s562 = ssub.s32 256, 256
          %563 = vsyncadd [#allocation17], %s562
          %s564 = sshll.u32 [#allocation18], 4
          %s565 = int_to_ptr.vmem [resolvable:$true] %s564
          %570 = dma.hbm_to_vmem [thread:$0]  %s8, 256, %s565, [#allocation17], 64, 64, 4
        $region40: #{tpu_custom_call.1} parent=11 // pred_fallthru
          _
        // Predicated region
        $region41: #{tpu_custom_call.1} parent=11 // pred_check
          %p571 = pneg %p275
        $region42: #{tpu_custom_call.1} parent=11 // pred_check_branch
          %573 = sbr.rel (%p571) target = $region44
        $region43: #{tpu_custom_call.1} parent=11 // pred_region
          %s575 = ssub.s32 16, 16
          %576 = vsyncadd [#allocation20], %s575
          %s578 = sshll.u32 [#allocation19], 4
          %s579 = int_to_ptr.vmem [resolvable:$true] %s578
          %581 = dma.hbm_to_vmem [thread:$0]  %s9, 16, %s579, [#allocation20]
        $region44: #{tpu_custom_call.1} parent=11 // pred_fallthru
          _
        // Predicated region
        $region45: #{tpu_custom_call.1} parent=11 // pred_check
          %p582 = pneg %p296
        $region46: #{tpu_custom_call.1} parent=11 // pred_check_branch
          %584 = sbr.rel (%p582) target = $region48
        $region47: #{tpu_custom_call.1} parent=11 // pred_region
          %s586 = ssub.s32 16, 16
          %587 = vsyncadd [#allocation20], %s586
          %s589 = sshll.u32 [#allocation21], 4
          %s590 = int_to_ptr.vmem [resolvable:$true] %s589
          %592 = dma.hbm_to_vmem [thread:$0]  %s10, 16, %s590, [#allocation20]
        $region48: #{tpu_custom_call.1} parent=11 // pred_fallthru
          _
        // Predicated region
        $region49: #{tpu_custom_call.1} parent=11 // pred_check
          %p593 = pneg %p317
        $region50: #{tpu_custom_call.1} parent=11 // pred_check_branch
          %595 = sbr.rel (%p593) target = $region52
        $region51: #{tpu_custom_call.1} parent=11 // pred_region
          %s597 = ssub.s32 16, 16
          %598 = vsyncadd [#allocation23], %s597
          %s600 = sshll.u32 [#allocation22], 4
          %s601 = int_to_ptr.vmem [resolvable:$true] %s600
          %603 = dma.hbm_to_vmem [thread:$0]  %s11, 16, %s601, [#allocation23]
        $region52: #{tpu_custom_call.1} parent=11 // pred_fallthru
          _
        // Predicated region
        $region53: #{tpu_custom_call.1} parent=11 // pred_check
          %p604 = pneg %p338
        $region54: #{tpu_custom_call.1} parent=11 // pred_check_branch
          %606 = sbr.rel (%p604) target = $region56
        $region55: #{tpu_custom_call.1} parent=11 // pred_region
          %s608 = ssub.s32 256, 256
          %609 = vsyncadd [#allocation23], %s608
          %s610 = sshll.u32 [#allocation24], 4
          %s611 = int_to_ptr.vmem [resolvable:$true] %s610
          %616 = dma.hbm_to_vmem [thread:$0]  %s12, 256, %s611, [#allocation23], 64, 64, 4
        $region56: #{tpu_custom_call.1} parent=11 // pred_fallthru
          _
        // Predicated region
        $region57: #{tpu_custom_call.1} parent=11 // pred_check
          %p617 = pneg %p359
        $region58: #{tpu_custom_call.1} parent=11 // pred_check_branch
          %619 = sbr.rel (%p617) target = $region60
        $region59: #{tpu_custom_call.1} parent=11 // pred_region
          %s621 = ssub.s32 16, 16
          %622 = vsyncadd [#allocation26], %s621
          %s624 = sshll.u32 [#allocation25], 4
          %s625 = int_to_ptr.vmem [resolvable:$true] %s624
          %627 = dma.hbm_to_vmem [thread:$0]  %s13, 16, %s625, [#allocation26]
        $region60: #{tpu_custom_call.1} parent=11 // pred_fallthru
          _
        // Predicated region
        $region61: #{tpu_custom_call.1} parent=11 // pred_check
          %p628 = pneg %p380
        $region62: #{tpu_custom_call.1} parent=11 // pred_check_branch
          %630 = sbr.rel (%p628) target = $region64
        $region63: #{tpu_custom_call.1} parent=11 // pred_region
          %s632 = ssub.s32 512, 512
          %633 = vsyncadd [#allocation26], %s632
          %s634 = sshll.u32 [#allocation27], 4
          %s635 = int_to_ptr.vmem [resolvable:$true] %s634
          %640 = dma.hbm_to_vmem [thread:$0]  %s14, 512, %s635, [#allocation26], 64, 64, 4
        $region64: #{tpu_custom_call.1} parent=11 // pred_fallthru
          _
        // Predicated region
        $region65: #{tpu_custom_call.1} parent=11 // pred_check
          %p641 = pneg %p401
        $region66: #{tpu_custom_call.1} parent=11 // pred_check_branch
          %643 = sbr.rel (%p641) target = $region68
        $region67: #{tpu_custom_call.1} parent=11 // pred_region
          %s645 = ssub.s32 16, 16
          %646 = vsyncadd [#allocation29], %s645
          %s648 = sshll.u32 [#allocation28], 4
          %s649 = int_to_ptr.vmem [resolvable:$true] %s648
          %651 = dma.hbm_to_vmem [thread:$0]  %s15, 16, %s649, [#allocation29]
        $region68: #{tpu_custom_call.1} parent=11 // pred_fallthru
          _
        // Predicated region
        $region69: #{tpu_custom_call.1} parent=11 // pred_check
          %p652 = pneg %p422
        $region70: #{tpu_custom_call.1} parent=11 // pred_check_branch
          %654 = sbr.rel (%p652) target = $region72
        $region71: #{tpu_custom_call.1} parent=11 // pred_region
          %s656 = ssub.s32 16, 16
          %657 = vsyncadd [#allocation29], %s656
          %s659 = sshll.u32 [#allocation30], 4
          %s660 = int_to_ptr.vmem [resolvable:$true] %s659
          %662 = dma.hbm_to_vmem [thread:$0]  %s16, 16, %s660, [#allocation29]
        $region72: #{tpu_custom_call.1} parent=11 // pred_fallthru
          _
        // Predicated region
        $region73: #{tpu_custom_call.1} parent=11 // pred_check
          %p663 = pneg %p443
        $region74: #{tpu_custom_call.1} parent=11 // pred_check_branch
          %665 = sbr.rel (%p663) target = $region76
        $region75: #{tpu_custom_call.1} parent=11 // pred_region
          %s667 = ssub.s32 16, 16
          %668 = vsyncadd [#allocation32], %s667
          %s670 = sshll.u32 [#allocation31], 4
          %s671 = int_to_ptr.vmem [resolvable:$true] %s670
          %673 = dma.hbm_to_vmem [thread:$0]  %s17, 16, %s671, [#allocation32]
        $region76: #{tpu_custom_call.1} parent=11 // pred_fallthru
          _
      $region12: #{tpu_custom_call.1} parent=5 // pred_fallthru
        _
      %p674 = scmp.lt.s32.totalorder %s41, 2
      // Predicated region
      $region77: #{tpu_custom_call.1} parent=5 // pred_check
        %p675 = pneg %p674
      $region78: #{tpu_custom_call.1} parent=5 // pred_check_branch
        %677 = sbr.rel (%p675) target = $region80
      $region79: #{tpu_custom_call.1} parent=5 // pred_region
        // Predicated region
        $region81: #{tpu_custom_call.1} parent=79 // pred_check
          %p678 = pneg %p75
        $region82: #{tpu_custom_call.1} parent=79 // pred_check_branch
          %680 = sbr.rel (%p678) target = $region84
        $region83: #{tpu_custom_call.1} parent=79 // pred_region
          %s681 = sand.u32 %s65, 1
          %s682 = scalar_lea.sflag [#allocation5], %s681
          %s683 = sand.u32 %s65, 1
          %s684 = smul.addr %s683, 8
          %s685 = scalar_lea.vmem [#allocation4], %s684
          %s687 = ssub.s32 128, 128
          %688 = vsyncadd %s682, %s687
          %s689 = sadd.s32 %s49, %s48
          %s690 = smul.addr %s689, 128
          %s691 = scalar_lea.hbm %s0, %s690
          %s693 = sshll.u32 %s685, 4
          %s694 = int_to_ptr.vmem [resolvable:$true] %s693
          %696 = dma.hbm_to_vmem [thread:$0]  %s691, 128, %s694, %s682
        $region84: #{tpu_custom_call.1} parent=79 // pred_fallthru
          _
        // Predicated region
        $region85: #{tpu_custom_call.1} parent=79 // pred_check
          %p697 = pneg %p101
        $region86: #{tpu_custom_call.1} parent=79 // pred_check_branch
          %699 = sbr.rel (%p697) target = $region88
        $region87: #{tpu_custom_call.1} parent=79 // pred_region
          %s700 = sand.u32 %s41, 1
          %s701 = scalar_lea.sflag [#allocation8], %s700
          %s702 = sand.u32 %s91, 1
          %s703 = smul.addr %s702, 8
          %s704 = scalar_lea.vmem [#allocation7], %s703
          %s706 = ssub.s32 128, 128
          %707 = vsyncadd %s701, %s706
          %s708 = smul.addr %s48, 128
          %s709 = scalar_lea.hbm %s1, %s708
          %s711 = sshll.u32 %s704, 4
          %s712 = int_to_ptr.vmem [resolvable:$true] %s711
          %714 = dma.hbm_to_vmem [thread:$0]  %s709, 128, %s712, %s701
        $region88: #{tpu_custom_call.1} parent=79 // pred_fallthru
          _
      $region80: #{tpu_custom_call.1} parent=5 // pred_fallthru
        _
      %p715 = scmp.le.s32.totalorder 1, %s41
      %p716 = scmp.lt.s32.totalorder %s41, 3
      %p717 = pnand %p715, %p716
      %p718 = pneg %p717
      // Predicated region
      $region89: #{tpu_custom_call.1} parent=5 // pred_check
        _
      $region90: #{tpu_custom_call.1} parent=5 // pred_check_branch
        %720 = sbr.rel (%p717) target = $region92
      $region91: #{tpu_custom_call.1} parent=5 // pred_region
        %s721 = ssub.s32 %s41, 1
        %s722 = sand.u32 %s68, 1
        %s723 = scalar_lea.sflag [#allocation5], %s722
        %s724 = sand.u32 %s68, 1
        %s725 = smul.addr %s724, 8
        %s726 = scalar_lea.vmem [#allocation4], %s725
        // Predicated region
        $region93: #{tpu_custom_call.1} parent=91 // pred_check
          %p727 = pneg %p81
        $region94: #{tpu_custom_call.1} parent=91 // pred_check_branch
          %729 = sbr.rel (%p727) target = $region96
        $region95: #{tpu_custom_call.1} parent=91 // pred_region
          %730 = dma.done %s723, 128
        $region96: #{tpu_custom_call.1} parent=91 // pred_fallthru
          _
        %s731 = sand.u32 %s46, 1
        %s732 = scalar_lea.sflag [#allocation8], %s731
        %s733 = sand.u32 %s94, 1
        %s734 = smul.addr %s733, 8
        %s735 = scalar_lea.vmem [#allocation7], %s734
        // Predicated region
        $region97: #{tpu_custom_call.1} parent=91 // pred_check
          %p736 = pneg %p107
        $region98: #{tpu_custom_call.1} parent=91 // pred_check_branch
          %738 = sbr.rel (%p736) target = $region100
        $region99: #{tpu_custom_call.1} parent=91 // pred_region
          %739 = dma.done %s732, 128
        $region100: #{tpu_custom_call.1} parent=91 // pred_fallthru
          _
        // Predicated region
        $region101: #{tpu_custom_call.1} parent=91 // pred_check
          %p740 = pneg %p128
        $region102: #{tpu_custom_call.1} parent=91 // pred_check_branch
          %742 = sbr.rel (%p740) target = $region104
        $region103: #{tpu_custom_call.1} parent=91 // pred_region
          %743 = dma.done [#allocation8], 256
        $region104: #{tpu_custom_call.1} parent=91 // pred_fallthru
          _
        // Predicated region
        $region105: #{tpu_custom_call.1} parent=91 // pred_check
          %p744 = pneg %p149
        $region106: #{tpu_custom_call.1} parent=91 // pred_check_branch
          %746 = sbr.rel (%p744) target = $region108
        $region107: #{tpu_custom_call.1} parent=91 // pred_region
          %747 = dma.done [#allocation11], 16
        $region108: #{tpu_custom_call.1} parent=91 // pred_fallthru
          _
        // Predicated region
        $region109: #{tpu_custom_call.1} parent=91 // pred_check
          %p748 = pneg %p170
        $region110: #{tpu_custom_call.1} parent=91 // pred_check_branch
          %750 = sbr.rel (%p748) target = $region112
        $region111: #{tpu_custom_call.1} parent=91 // pred_region
          %751 = dma.done [#allocation11], 256
        $region112: #{tpu_custom_call.1} parent=91 // pred_fallthru
          _
        // Predicated region
        $region113: #{tpu_custom_call.1} parent=91 // pred_check
          %p752 = pneg %p191
        $region114: #{tpu_custom_call.1} parent=91 // pred_check_branch
          %754 = sbr.rel (%p752) target = $region116
        $region115: #{tpu_custom_call.1} parent=91 // pred_region
          %755 = dma.done [#allocation14], 16
        $region116: #{tpu_custom_call.1} parent=91 // pred_fallthru
          _
        // Predicated region
        $region117: #{tpu_custom_call.1} parent=91 // pred_check
          %p756 = pneg %p212
        $region118: #{tpu_custom_call.1} parent=91 // pred_check_branch
          %758 = sbr.rel (%p756) target = $region120
        $region119: #{tpu_custom_call.1} parent=91 // pred_region
          %759 = dma.done [#allocation14], 256
        $region120: #{tpu_custom_call.1} parent=91 // pred_fallthru
          _
        // Predicated region
        $region121: #{tpu_custom_call.1} parent=91 // pred_check
          %p760 = pneg %p233
        $region122: #{tpu_custom_call.1} parent=91 // pred_check_branch
          %762 = sbr.rel (%p760) target = $region124
        $region123: #{tpu_custom_call.1} parent=91 // pred_region
          %763 = dma.done [#allocation17], 16
        $region124: #{tpu_custom_call.1} parent=91 // pred_fallthru
          _
        // Predicated region
        $region125: #{tpu_custom_call.1} parent=91 // pred_check
          %p764 = pneg %p254
        $region126: #{tpu_custom_call.1} parent=91 // pred_check_branch
          %766 = sbr.rel (%p764) target = $region128
        $region127: #{tpu_custom_call.1} parent=91 // pred_region
          %767 = dma.done [#allocation17], 256
        $region128: #{tpu_custom_call.1} parent=91 // pred_fallthru
          _
        // Predicated region
        $region129: #{tpu_custom_call.1} parent=91 // pred_check
          %p768 = pneg %p275
        $region130: #{tpu_custom_call.1} parent=91 // pred_check_branch
          %770 = sbr.rel (%p768) target = $region132
        $region131: #{tpu_custom_call.1} parent=91 // pred_region
          %771 = dma.done [#allocation20], 16
        $region132: #{tpu_custom_call.1} parent=91 // pred_fallthru
          _
        // Predicated region
        $region133: #{tpu_custom_call.1} parent=91 // pred_check
          %p772 = pneg %p296
        $region134: #{tpu_custom_call.1} parent=91 // pred_check_branch
          %774 = sbr.rel (%p772) target = $region136
        $region135: #{tpu_custom_call.1} parent=91 // pred_region
          %775 = dma.done [#allocation20], 16
        $region136: #{tpu_custom_call.1} parent=91 // pred_fallthru
          _
        // Predicated region
        $region137: #{tpu_custom_call.1} parent=91 // pred_check
          %p776 = pneg %p317
        $region138: #{tpu_custom_call.1} parent=91 // pred_check_branch
          %778 = sbr.rel (%p776) target = $region140
        $region139: #{tpu_custom_call.1} parent=91 // pred_region
          %779 = dma.done [#allocation23], 16
        $region140: #{tpu_custom_call.1} parent=91 // pred_fallthru
          _
        // Predicated region
        $region141: #{tpu_custom_call.1} parent=91 // pred_check
          %p780 = pneg %p338
        $region142: #{tpu_custom_call.1} parent=91 // pred_check_branch
          %782 = sbr.rel (%p780) target = $region144
        $region143: #{tpu_custom_call.1} parent=91 // pred_region
          %783 = dma.done [#allocation23], 256
        $region144: #{tpu_custom_call.1} parent=91 // pred_fallthru
          _
        // Predicated region
        $region145: #{tpu_custom_call.1} parent=91 // pred_check
          %p784 = pneg %p359
        $region146: #{tpu_custom_call.1} parent=91 // pred_check_branch
          %786 = sbr.rel (%p784) target = $region148
        $region147: #{tpu_custom_call.1} parent=91 // pred_region
          %787 = dma.done [#allocation26], 16
        $region148: #{tpu_custom_call.1} parent=91 // pred_fallthru
          _
        // Predicated region
        $region149: #{tpu_custom_call.1} parent=91 // pred_check
          %p788 = pneg %p380
        $region150: #{tpu_custom_call.1} parent=91 // pred_check_branch
          %790 = sbr.rel (%p788) target = $region152
        $region151: #{tpu_custom_call.1} parent=91 // pred_region
          %791 = dma.done [#allocation26], 512
        $region152: #{tpu_custom_call.1} parent=91 // pred_fallthru
          _
        // Predicated region
        $region153: #{tpu_custom_call.1} parent=91 // pred_check
          %p792 = pneg %p401
        $region154: #{tpu_custom_call.1} parent=91 // pred_check_branch
          %794 = sbr.rel (%p792) target = $region156
        $region155: #{tpu_custom_call.1} parent=91 // pred_region
          %795 = dma.done [#allocation29], 16
        $region156: #{tpu_custom_call.1} parent=91 // pred_fallthru
          _
        // Predicated region
        $region157: #{tpu_custom_call.1} parent=91 // pred_check
          %p796 = pneg %p422
        $region158: #{tpu_custom_call.1} parent=91 // pred_check_branch
          %798 = sbr.rel (%p796) target = $region160
        $region159: #{tpu_custom_call.1} parent=91 // pred_region
          %799 = dma.done [#allocation29], 16
        $region160: #{tpu_custom_call.1} parent=91 // pred_fallthru
          _
        // Predicated region
        $region161: #{tpu_custom_call.1} parent=91 // pred_check
          %p800 = pneg %p443
        $region162: #{tpu_custom_call.1} parent=91 // pred_check_branch
          %802 = sbr.rel (%p800) target = $region164
        $region163: #{tpu_custom_call.1} parent=91 // pred_region
          %803 = dma.done [#allocation32], 16
        $region164: #{tpu_custom_call.1} parent=91 // pred_fallthru
          _
        %s804 = sand.u32 %s68, 1
        %s805 = scalar_lea.sflag [#allocation5], %s804
        %s806 = sand.u32 %s68, 1
        %s807 = smul.addr %s806, 8
        %s808 = scalar_lea.vmem [#allocation4], %s807
        %p809 = pneg %p81
        %p810 = pneg %p78
        %s811 = sand.u32 %s46, 1
        %s812 = scalar_lea.sflag [#allocation8], %s811
        %s813 = sand.u32 %s94, 1
        %s814 = smul.addr %s813, 8
        %s815 = scalar_lea.vmem [#allocation7], %s814
        %p816 = pneg %p107
        %p817 = pneg %p104
        %p818 = pneg %p128
        %p819 = pneg %p125
        %p820 = pneg %p149
        %p821 = pneg %p146
        %p822 = pneg %p170
        %p823 = pneg %p167
        %p824 = pneg %p191
        %p825 = pneg %p188
        %p826 = pneg %p212
        %p827 = pneg %p209
        %p828 = pneg %p233
        %p829 = pneg %p230
        %p830 = pneg %p254
        %p831 = pneg %p251
        %p832 = pneg %p275
        %p833 = pneg %p272
        %p834 = pneg %p296
        %p835 = pneg %p293
        %p836 = pneg %p317
        %p837 = pneg %p314
        %p838 = pneg %p338
        %p839 = pneg %p335
        %p840 = pneg %p359
        %p841 = pneg %p356
        %p842 = pneg %p380
        %p843 = pneg %p377
        %p844 = pneg %p401
        %p845 = pneg %p398
        %p846 = pneg %p422
        %p847 = pneg %p419
        %p848 = pneg %p443
        %p849 = pneg %p440
        %p850 = pneg %p471
        %p851 = pneg %p468
        %s852 = sand.u32 %s458, 1
        %s853 = scalar_lea.sflag [#allocation6], %s852
        %s854 = sand.u32 %s458, 1
        %s855 = smul.addr %s854, 8
        %s856 = scalar_lea.vmem [#allocation33], %s855
        %p858 = scmp.eq.s32.totalorder %s51, 0
        // Predicated region
        $region165: #{tpu_custom_call.1} parent=91 // pred_check
          %p859 = pneg %p858
        $region166: #{tpu_custom_call.1} parent=91 // pred_check_branch
          %861 = sbr.rel (%p859) target = $region168
        $region167: #{tpu_custom_call.1} parent=91 // pred_region
          %v862 = vld [vmem:[%s735] sm:$0xff]
          %v863 = vpack.c.bf16 %v862, %v862
          %v864 = vld [vmem:[#allocation12] sm:$0xf]
          %v865 = vld [vmem:[#allocation12 + $0x4] sm:$0xf]
          %v866 = vld [vmem:[#allocation12 + $0x8] sm:$0xf]
          %v867 = vld [vmem:[#allocation12 + $0xc] sm:$0xf]
          %v868 = vld [vmem:[#allocation13] sm:$0x1]
          %v870 = vlaneseq
          %v871 = vshrl.u32 %v870, 7
          %v872 = vsub.s32 0, %v871
          %v873 = vrot.slane %v868, %v872
          %v879 = vunpack.c.l.b16 %v864
          %v880 = vunpack.c.l.b16 %v865
          %v881 = vunpack.c.l.b16 %v866
          %v882 = vunpack.c.l.b16 %v867
          %v883 = vpack.c.b16 %v880, %v879
          %v884 = vpack.c.b16 %v882, %v881
          %vm887 = vcmask 261120
          %v889 = vsel %vm887, %v863, 0
          %891 = vmatprep.subr.bf16.mxu0 0
          %892 = vmatpush1.bf16.msra.mxu0 %v883
          %893 = vmatprep.subr.bf16.mxu0 0
          %894 = vmatpush1.bf16.msra.mxu0 %v884
          %895 = vmatprep.subr.bf16.mxu0 0
          %896 = vmatpush1.bf16.msra.mxu0 0
          %897 = vmatprep.subr.bf16.mxu0 0
          %898 = vmatpush1.bf16.msra.mxu0 0
          %899 = vmatprep.subr.bf16.mxu0 0
          %900 = vmatpush1.bf16.msra.mxu0 0
          %901 = vmatprep.subr.bf16.mxu0 0
          %902 = vmatpush1.bf16.msra.mxu0 0
          %903 = vmatprep.subr.bf16.mxu0 0
          %904 = vmatpush1.bf16.msra.mxu0 0
          %905 = vmatprep.subr.bf16.mxu0 0
          %906 = vmatpush1.bf16.msra.mxu0 0
          %907 = vmatprep.subr.bf16.mxu0 0
          %908 = vmatpush1.bf16.msra.mxu0 0
          %909 = vmatprep.subr.bf16.mxu0 0
          %910 = vmatpush1.bf16.msra.mxu0 0
          %911 = vmatprep.subr.bf16.mxu0 0
          %912 = vmatpush1.bf16.msra.mxu0 0
          %913 = vmatprep.subr.bf16.mxu0 0
          %914 = vmatpush1.bf16.msra.mxu0 0
          %915 = vmatprep.subr.bf16.mxu0 0
          %916 = vmatpush1.bf16.msra.mxu0 0
          %917 = vmatprep.subr.bf16.mxu0 0
          %918 = vmatpush1.bf16.msra.mxu0 0
          %919 = vmatprep.subr.bf16.mxu0 0
          %920 = vmatpush1.bf16.msra.mxu0 0
          %921 = vmatprep.subr.bf16.mxu0 0
          %922 = vmatpush1.bf16.msra.mxu0 0
          %923 = vmatprep.mubr.bf16.mxu0 0
          %924 = vmatmul.mubr.bf16.gmra.mrb[0].mxu0 %v889
          %v925 = vpop.f32.mrb[0].mxu0
          %v926 = vadd.f32 %v873, %v925
          %v927 = vpop.f32.mrb[0].mxu0
          %v928 = vpop.f32.mrb[0].mxu0
          %v929 = vpop.f32.mrb[0].mxu0
          %930 = vdwg.mxu0
          %v931 = vld [vmem:[#allocation15] sm:$0xf]
          %v932 = vld [vmem:[#allocation15 + $0x4] sm:$0xf]
          %v933 = vld [vmem:[#allocation15 + $0x8] sm:$0xf]
          %v934 = vld [vmem:[#allocation15 + $0xc] sm:$0xf]
          %v935 = vld [vmem:[#allocation16] sm:$0x1]
          %v937 = vlaneseq
          %v938 = vshrl.u32 %v937, 7
          %v939 = vsub.s32 0, %v938
          %v940 = vrot.slane %v935, %v939
          %v946 = vunpack.c.l.b16 %v931
          %v947 = vunpack.c.l.b16 %v932
          %v948 = vunpack.c.l.b16 %v933
          %v949 = vunpack.c.l.b16 %v934
          %v950 = vpack.c.b16 %v947, %v946
          %v951 = vpack.c.b16 %v949, %v948
          %954 = vmatprep.subr.bf16.mxu0 0
          %955 = vmatpush1.bf16.msra.mxu0 %v950
          %956 = vmatprep.subr.bf16.mxu0 0
          %957 = vmatpush1.bf16.msra.mxu0 %v951
          %958 = vmatprep.subr.bf16.mxu0 0
          %959 = vmatpush1.bf16.msra.mxu0 0
          %960 = vmatprep.subr.bf16.mxu0 0
          %961 = vmatpush1.bf16.msra.mxu0 0
          %962 = vmatprep.subr.bf16.mxu0 0
          %963 = vmatpush1.bf16.msra.mxu0 0
          %964 = vmatprep.subr.bf16.mxu0 0
          %965 = vmatpush1.bf16.msra.mxu0 0
          %966 = vmatprep.subr.bf16.mxu0 0
          %967 = vmatpush1.bf16.msra.mxu0 0
          %968 = vmatprep.subr.bf16.mxu0 0
          %969 = vmatpush1.bf16.msra.mxu0 0
          %970 = vmatprep.subr.bf16.mxu0 0
          %971 = vmatpush1.bf16.msra.mxu0 0
          %972 = vmatprep.subr.bf16.mxu0 0
          %973 = vmatpush1.bf16.msra.mxu0 0
          %974 = vmatprep.subr.bf16.mxu0 0
          %975 = vmatpush1.bf16.msra.mxu0 0
          %976 = vmatprep.subr.bf16.mxu0 0
          %977 = vmatpush1.bf16.msra.mxu0 0
          %978 = vmatprep.subr.bf16.mxu0 0
          %979 = vmatpush1.bf16.msra.mxu0 0
          %980 = vmatprep.subr.bf16.mxu0 0
          %981 = vmatpush1.bf16.msra.mxu0 0
          %982 = vmatprep.subr.bf16.mxu0 0
          %983 = vmatpush1.bf16.msra.mxu0 0
          %984 = vmatprep.subr.bf16.mxu0 0
          %985 = vmatpush1.bf16.msra.mxu0 0
          %986 = vmatprep.mubr.bf16.mxu0 0
          %987 = vmatmul.mubr.bf16.gmra.mrb[0].mxu0 %v889
          %v988 = vpop.f32.mrb[0].mxu0
          %v989 = vadd.f32 %v940, %v988
          %v990 = vpop.f32.mrb[0].mxu0
          %v991 = vpop.f32.mrb[0].mxu0
          %v992 = vpop.f32.mrb[0].mxu0
          %993 = vdwg.mxu0
          %v994 = vpack.c.bf16 %v926, %v926
          %996 = vrot.lane.b32.xlu0 %v994, 120
          %v997 = vpop.permute.xlu0 %996
          %998 = vrot.lane.b32.xlu0 %v994, 112
          %v999 = vpop.permute.xlu0 %998
          %1000 = vrot.lane.b32.xlu0 %v994, 104
          %v1001 = vpop.permute.xlu0 %1000
          %v1003 = vunpack.c.l.s4 1983009808
          %v1004 = vunpack.c.0.s8 %v1003
          %v1005 = vlaneseq
          %v1006 = vshrl.u32 %v1005, 7
          %v1007 = vsub.s32 %v1004, %v1006
          %v1008 = vrot.slane %v994, %v1007
          %v1011 = vunpack.c.l.s4 1983009808
          %v1012 = vunpack.c.0.s8 %v1011
          %v1013 = vlaneseq
          %v1014 = vshrl.u32 %v1013, 7
          %v1015 = vsub.s32 %v1012, %v1014
          %v1016 = vrot.slane %v999, %v1015
          %v1017 = vcombine.low %v1008, %v1016
          %v1018 = vcombine.high %v1008, %v1016
          %v1020 = vunpack.c.l.s4 1934713408
          %v1021 = vunpack.c.0.s8 %v1020
          %v1022 = vlaneseq
          %v1023 = vshrl.u32 %v1022, 7
          %v1024 = vsub.s32 %v1021, %v1023
          %v1025 = vrot.slane %v1017, %v1024
          %v1027 = vunpack.c.l.s4 1934713408
          %v1028 = vunpack.c.0.s8 %v1027
          %v1029 = vlaneseq
          %v1030 = vshrl.u32 %v1029, 7
          %v1031 = vsub.s32 %v1028, %v1030
          %v1032 = vrot.slane %v1018, %v1031
          %v1033 = vcombine.high %v1025, 0
          %v1034 = vcombine.high %v1032, 0
          %v1037 = vunpack.c.l.s4 1983009808
          %v1038 = vunpack.c.0.s8 %v1037
          %v1039 = vlaneseq
          %v1040 = vshrl.u32 %v1039, 7
          %v1041 = vsub.s32 %v1038, %v1040
          %v1042 = vrot.slane %v997, %v1041
          %v1045 = vunpack.c.l.s4 1983009808
          %v1046 = vunpack.c.0.s8 %v1045
          %v1047 = vlaneseq
          %v1048 = vshrl.u32 %v1047, 7
          %v1049 = vsub.s32 %v1046, %v1048
          %v1050 = vrot.slane %v1001, %v1049
          %v1051 = vcombine.low %v1042, %v1050
          %v1052 = vcombine.high %v1042, %v1050
          %v1054 = vunpack.c.l.s4 1934713408
          %v1055 = vunpack.c.0.s8 %v1054
          %v1056 = vlaneseq
          %v1057 = vshrl.u32 %v1056, 7
          %v1058 = vsub.s32 %v1055, %v1057
          %v1059 = vrot.slane %v1051, %v1058
          %v1061 = vunpack.c.l.s4 1934713408
          %v1062 = vunpack.c.0.s8 %v1061
          %v1063 = vlaneseq
          %v1064 = vshrl.u32 %v1063, 7
          %v1065 = vsub.s32 %v1062, %v1064
          %v1066 = vrot.slane %v1052, %v1065
          %v1067 = vcombine.high %v1059, 0
          %v1068 = vcombine.high %v1066, 0
          %v1071 = vpack.i.b16 %v1059, %v1025
          %v1073 = vshrl.u32 %v1025, 16
          %v1074 = vshrl.u32 %v1059, 16
          %v1075 = vpack.i.b16 %v1074, %v1073
          %v1079 = vpack.i.b16 %v1067, %v1033
          %v1081 = vshrl.u32 %v1033, 16
          %v1082 = vshrl.u32 %v1067, 16
          %v1083 = vpack.i.b16 %v1082, %v1081
          %v1087 = vpack.i.b16 %v1066, %v1032
          %v1089 = vshrl.u32 %v1032, 16
          %v1090 = vshrl.u32 %v1066, 16
          %v1091 = vpack.i.b16 %v1090, %v1089
          %v1095 = vpack.i.b16 %v1068, %v1034
          %v1097 = vshrl.u32 %v1034, 16
          %v1098 = vshrl.u32 %v1068, 16
          %v1099 = vpack.i.b16 %v1098, %v1097
          %v1101 = vcombine.low %v1071, %v1087
          %v1103 = vunpack.c.l.s4 1983009808
          %v1104 = vunpack.c.0.s8 %v1103
          %v1105 = vlaneseq
          %v1106 = vshrl.u32 %v1105, 7
          %v1107 = vsub.s32 %v1104, %v1106
          %v1108 = vrot.slane %v1101, %v1107
          %v1109 = vcombine.low %v1079, %v1095
          %v1111 = vunpack.c.l.s4 1983009808
          %v1112 = vunpack.c.0.s8 %v1111
          %v1113 = vlaneseq
          %v1114 = vshrl.u32 %v1113, 7
          %v1115 = vsub.s32 %v1112, %v1114
          %v1116 = vrot.slane %v1109, %v1115
          %v1117 = vcombine.low %v1108, %v1116
          %v1119 = vunpack.c.l.s4 1934713408
          %v1120 = vunpack.c.0.s8 %v1119
          %v1121 = vlaneseq
          %v1122 = vshrl.u32 %v1121, 7
          %v1123 = vsub.s32 %v1120, %v1122
          %v1124 = vrot.slane %v1117, %v1123
          %v1125 = vcombine.high %v1124, 0
          %v1126 = vcombine.low %v1075, %v1091
          %v1128 = vunpack.c.l.s4 1983009808
          %v1129 = vunpack.c.0.s8 %v1128
          %v1130 = vlaneseq
          %v1131 = vshrl.u32 %v1130, 7
          %v1132 = vsub.s32 %v1129, %v1131
          %v1133 = vrot.slane %v1126, %v1132
          %v1134 = vcombine.low %v1083, %v1099
          %v1136 = vunpack.c.l.s4 1983009808
          %v1137 = vunpack.c.0.s8 %v1136
          %v1138 = vlaneseq
          %v1139 = vshrl.u32 %v1138, 7
          %v1140 = vsub.s32 %v1137, %v1139
          %v1141 = vrot.slane %v1134, %v1140
          %v1142 = vcombine.low %v1133, %v1141
          %v1144 = vunpack.c.l.s4 1934713408
          %v1145 = vunpack.c.0.s8 %v1144
          %v1146 = vlaneseq
          %v1147 = vshrl.u32 %v1146, 7
          %v1148 = vsub.s32 %v1145, %v1147
          %v1149 = vrot.slane %v1142, %v1148
          %v1150 = vcombine.high %v1149, 0
          %v1153 = vpack.i.b16 %v1149, %v1124
          %v1155 = vshrl.u32 %v1124, 16
          %v1156 = vshrl.u32 %v1149, 16
          %v1157 = vpack.i.b16 %v1156, %v1155
          %v1161 = vpack.i.b16 %v1150, %v1125
          %v1163 = vshrl.u32 %v1125, 16
          %v1164 = vshrl.u32 %v1150, 16
          %v1165 = vpack.i.b16 %v1164, %v1163
          %vm1167 = vcmask 60416
          %1168 = vst.msk [vmem:[#allocation2] sm:$0xf] %vm1167, %v1153
          %1169 = vst.msk [vmem:[#allocation2 + $0x4] sm:$0xf] %vm1167, %v1157
          %1170 = vst.msk [vmem:[#allocation2 + $0x8] sm:$0xf] %vm1167, %v1161
          %1171 = vst.msk [vmem:[#allocation2 + $0xc] sm:$0xf] %vm1167, %v1165
          %v1172 = vpack.c.bf16 %v989, %v989
          %1174 = vrot.lane.b32.xlu0 %v1172, 120
          %v1175 = vpop.permute.xlu0 %1174
          %1176 = vrot.lane.b32.xlu0 %v1172, 112
          %v1177 = vpop.permute.xlu0 %1176
          %1178 = vrot.lane.b32.xlu0 %v1172, 104
          %v1179 = vpop.permute.xlu0 %1178
          %v1181 = vunpack.c.l.s4 1983009808
          %v1182 = vunpack.c.0.s8 %v1181
          %v1183 = vlaneseq
          %v1184 = vshrl.u32 %v1183, 7
          %v1185 = vsub.s32 %v1182, %v1184
          %v1186 = vrot.slane %v1172, %v1185
          %v1189 = vunpack.c.l.s4 1983009808
          %v1190 = vunpack.c.0.s8 %v1189
          %v1191 = vlaneseq
          %v1192 = vshrl.u32 %v1191, 7
          %v1193 = vsub.s32 %v1190, %v1192
          %v1194 = vrot.slane %v1177, %v1193
          %v1195 = vcombine.low %v1186, %v1194
          %v1196 = vcombine.high %v1186, %v1194
          %v1198 = vunpack.c.l.s4 1934713408
          %v1199 = vunpack.c.0.s8 %v1198
          %v1200 = vlaneseq
          %v1201 = vshrl.u32 %v1200, 7
          %v1202 = vsub.s32 %v1199, %v1201
          %v1203 = vrot.slane %v1195, %v1202
          %v1205 = vunpack.c.l.s4 1934713408
          %v1206 = vunpack.c.0.s8 %v1205
          %v1207 = vlaneseq
          %v1208 = vshrl.u32 %v1207, 7
          %v1209 = vsub.s32 %v1206, %v1208
          %v1210 = vrot.slane %v1196, %v1209
          %v1211 = vcombine.high %v1203, 0
          %v1212 = vcombine.high %v1210, 0
          %v1215 = vunpack.c.l.s4 1983009808
          %v1216 = vunpack.c.0.s8 %v1215
          %v1217 = vlaneseq
          %v1218 = vshrl.u32 %v1217, 7
          %v1219 = vsub.s32 %v1216, %v1218
          %v1220 = vrot.slane %v1175, %v1219
          %v1223 = vunpack.c.l.s4 1983009808
          %v1224 = vunpack.c.0.s8 %v1223
          %v1225 = vlaneseq
          %v1226 = vshrl.u32 %v1225, 7
          %v1227 = vsub.s32 %v1224, %v1226
          %v1228 = vrot.slane %v1179, %v1227
          %v1229 = vcombine.low %v1220, %v1228
          %v1230 = vcombine.high %v1220, %v1228
          %v1232 = vunpack.c.l.s4 1934713408
          %v1233 = vunpack.c.0.s8 %v1232
          %v1234 = vlaneseq
          %v1235 = vshrl.u32 %v1234, 7
          %v1236 = vsub.s32 %v1233, %v1235
          %v1237 = vrot.slane %v1229, %v1236
          %v1239 = vunpack.c.l.s4 1934713408
          %v1240 = vunpack.c.0.s8 %v1239
          %v1241 = vlaneseq
          %v1242 = vshrl.u32 %v1241, 7
          %v1243 = vsub.s32 %v1240, %v1242
          %v1244 = vrot.slane %v1230, %v1243
          %v1245 = vcombine.high %v1237, 0
          %v1246 = vcombine.high %v1244, 0
          %v1249 = vpack.i.b16 %v1237, %v1203
          %v1251 = vshrl.u32 %v1203, 16
          %v1252 = vshrl.u32 %v1237, 16
          %v1253 = vpack.i.b16 %v1252, %v1251
          %v1257 = vpack.i.b16 %v1245, %v1211
          %v1259 = vshrl.u32 %v1211, 16
          %v1260 = vshrl.u32 %v1245, 16
          %v1261 = vpack.i.b16 %v1260, %v1259
          %v1265 = vpack.i.b16 %v1244, %v1210
          %v1267 = vshrl.u32 %v1210, 16
          %v1268 = vshrl.u32 %v1244, 16
          %v1269 = vpack.i.b16 %v1268, %v1267
          %v1273 = vpack.i.b16 %v1246, %v1212
          %v1275 = vshrl.u32 %v1212, 16
          %v1276 = vshrl.u32 %v1246, 16
          %v1277 = vpack.i.b16 %v1276, %v1275
          %v1279 = vcombine.low %v1249, %v1265
          %v1281 = vunpack.c.l.s4 1983009808
          %v1282 = vunpack.c.0.s8 %v1281
          %v1283 = vlaneseq
          %v1284 = vshrl.u32 %v1283, 7
          %v1285 = vsub.s32 %v1282, %v1284
          %v1286 = vrot.slane %v1279, %v1285
          %v1287 = vcombine.low %v1257, %v1273
          %v1289 = vunpack.c.l.s4 1983009808
          %v1290 = vunpack.c.0.s8 %v1289
          %v1291 = vlaneseq
          %v1292 = vshrl.u32 %v1291, 7
          %v1293 = vsub.s32 %v1290, %v1292
          %v1294 = vrot.slane %v1287, %v1293
          %v1295 = vcombine.low %v1286, %v1294
          %v1297 = vunpack.c.l.s4 1934713408
          %v1298 = vunpack.c.0.s8 %v1297
          %v1299 = vlaneseq
          %v1300 = vshrl.u32 %v1299, 7
          %v1301 = vsub.s32 %v1298, %v1300
          %v1302 = vrot.slane %v1295, %v1301
          %v1303 = vcombine.high %v1302, 0
          %v1304 = vcombine.low %v1253, %v1269
          %v1306 = vunpack.c.l.s4 1983009808
          %v1307 = vunpack.c.0.s8 %v1306
          %v1308 = vlaneseq
          %v1309 = vshrl.u32 %v1308, 7
          %v1310 = vsub.s32 %v1307, %v1309
          %v1311 = vrot.slane %v1304, %v1310
          %v1312 = vcombine.low %v1261, %v1277
          %v1314 = vunpack.c.l.s4 1983009808
          %v1315 = vunpack.c.0.s8 %v1314
          %v1316 = vlaneseq
          %v1317 = vshrl.u32 %v1316, 7
          %v1318 = vsub.s32 %v1315, %v1317
          %v1319 = vrot.slane %v1312, %v1318
          %v1320 = vcombine.low %v1311, %v1319
          %v1322 = vunpack.c.l.s4 1934713408
          %v1323 = vunpack.c.0.s8 %v1322
          %v1324 = vlaneseq
          %v1325 = vshrl.u32 %v1324, 7
          %v1326 = vsub.s32 %v1323, %v1325
          %v1327 = vrot.slane %v1320, %v1326
          %v1328 = vcombine.high %v1327, 0
          %v1331 = vpack.i.b16 %v1327, %v1302
          %v1333 = vshrl.u32 %v1302, 16
          %v1334 = vshrl.u32 %v1327, 16
          %v1335 = vpack.i.b16 %v1334, %v1333
          %v1339 = vpack.i.b16 %v1328, %v1303
          %v1341 = vshrl.u32 %v1303, 16
          %v1342 = vshrl.u32 %v1328, 16
          %v1343 = vpack.i.b16 %v1342, %v1341
          %1345 = vst.msk [vmem:[#allocation3] sm:$0xf] %vm1167, %v1331
          %1346 = vst.msk [vmem:[#allocation3 + $0x4] sm:$0xf] %vm1167, %v1335
          %1347 = vst.msk [vmem:[#allocation3 + $0x8] sm:$0xf] %vm1167, %v1339
          %1348 = vst.msk [vmem:[#allocation3 + $0xc] sm:$0xf] %vm1167, %v1343
        $region168: #{tpu_custom_call.1} parent=91 // pred_fallthru
          _
        %v1349 = vld [vmem:[%s726] sm:$0xff]
        %v1350 = vpack.c.bf16 %v1349, %v1349
        %v1351 = vld [vmem:[#allocation9] sm:$0xf]
        %v1352 = vld [vmem:[#allocation9 + $0x4] sm:$0xf]
        %v1353 = vld [vmem:[#allocation9 + $0x8] sm:$0xf]
        %v1354 = vld [vmem:[#allocation9 + $0xc] sm:$0xf]
        %v1355 = vld [vmem:[#allocation10] sm:$0x1]
        %v1357 = vlaneseq
        %v1358 = vshrl.u32 %v1357, 7
        %v1359 = vsub.s32 0, %v1358
        %v1360 = vrot.slane %v1355, %v1359
        %v1366 = vunpack.c.l.b16 %v1351
        %v1367 = vunpack.c.l.b16 %v1352
        %v1368 = vunpack.c.l.b16 %v1353
        %v1369 = vunpack.c.l.b16 %v1354
        %v1370 = vpack.c.b16 %v1367, %v1366
        %v1371 = vpack.c.b16 %v1369, %v1368
        %vm1374 = vcmask 261120
        %v1376 = vsel %vm1374, %v1350, 0
        %1378 = vmatprep.subr.bf16.mxu0 0
        %1379 = vmatpush1.bf16.msra.mxu0 %v1370
        %1380 = vmatprep.subr.bf16.mxu0 0
        %1381 = vmatpush1.bf16.msra.mxu0 %v1371
        %1382 = vmatprep.subr.bf16.mxu0 0
        %1383 = vmatpush1.bf16.msra.mxu0 0
        %1384 = vmatprep.subr.bf16.mxu0 0
        %1385 = vmatpush1.bf16.msra.mxu0 0
        %1386 = vmatprep.subr.bf16.mxu0 0
        %1387 = vmatpush1.bf16.msra.mxu0 0
        %1388 = vmatprep.subr.bf16.mxu0 0
        %1389 = vmatpush1.bf16.msra.mxu0 0
        %1390 = vmatprep.subr.bf16.mxu0 0
        %1391 = vmatpush1.bf16.msra.mxu0 0
        %1392 = vmatprep.subr.bf16.mxu0 0
        %1393 = vmatpush1.bf16.msra.mxu0 0
        %1394 = vmatprep.subr.bf16.mxu0 0
        %1395 = vmatpush1.bf16.msra.mxu0 0
        %1396 = vmatprep.subr.bf16.mxu0 0
        %1397 = vmatpush1.bf16.msra.mxu0 0
        %1398 = vmatprep.subr.bf16.mxu0 0
        %1399 = vmatpush1.bf16.msra.mxu0 0
        %1400 = vmatprep.subr.bf16.mxu0 0
        %1401 = vmatpush1.bf16.msra.mxu0 0
        %1402 = vmatprep.subr.bf16.mxu0 0
        %1403 = vmatpush1.bf16.msra.mxu0 0
        %1404 = vmatprep.subr.bf16.mxu0 0
        %1405 = vmatpush1.bf16.msra.mxu0 0
        %1406 = vmatprep.subr.bf16.mxu0 0
        %1407 = vmatpush1.bf16.msra.mxu0 0
        %1408 = vmatprep.subr.bf16.mxu0 0
        %1409 = vmatpush1.bf16.msra.mxu0 0
        %1410 = vmatprep.mubr.bf16.mxu0 0
        %1411 = vmatmul.mubr.bf16.gmra.mrb[0].mxu0 %v1376
        %v1412 = vpop.f32.mrb[0].mxu0
        %v1413 = vadd.f32 %v1360, %v1412
        %v1414 = vpop.f32.mrb[0].mxu0
        %v1415 = vpop.f32.mrb[0].mxu0
        %v1416 = vpop.f32.mrb[0].mxu0
        %1417 = vdwg.mxu0
        %v1418 = vpack.c.bf16 %v1413, %v1413
        %1420 = vrot.lane.b32.xlu0 %v1418, 120
        %v1421 = vpop.permute.xlu0 %1420
        %1422 = vrot.lane.b32.xlu0 %v1418, 112
        %v1423 = vpop.permute.xlu0 %1422
        %1424 = vrot.lane.b32.xlu0 %v1418, 104
        %v1425 = vpop.permute.xlu0 %1424
        %v1427 = vunpack.c.l.s4 1983009808
        %v1428 = vunpack.c.0.s8 %v1427
        %v1429 = vlaneseq
        %v1430 = vshrl.u32 %v1429, 7
        %v1431 = vsub.s32 %v1428, %v1430
        %v1432 = vrot.slane %v1418, %v1431
        %v1435 = vunpack.c.l.s4 1983009808
        %v1436 = vunpack.c.0.s8 %v1435
        %v1437 = vlaneseq
        %v1438 = vshrl.u32 %v1437, 7
        %v1439 = vsub.s32 %v1436, %v1438
        %v1440 = vrot.slane %v1423, %v1439
        %v1441 = vcombine.low %v1432, %v1440
        %v1442 = vcombine.high %v1432, %v1440
        %v1444 = vunpack.c.l.s4 1934713408
        %v1445 = vunpack.c.0.s8 %v1444
        %v1446 = vlaneseq
        %v1447 = vshrl.u32 %v1446, 7
        %v1448 = vsub.s32 %v1445, %v1447
        %v1449 = vrot.slane %v1441, %v1448
        %v1451 = vunpack.c.l.s4 1934713408
        %v1452 = vunpack.c.0.s8 %v1451
        %v1453 = vlaneseq
        %v1454 = vshrl.u32 %v1453, 7
        %v1455 = vsub.s32 %v1452, %v1454
        %v1456 = vrot.slane %v1442, %v1455
        %v1457 = vcombine.high %v1449, 0
        %v1458 = vcombine.high %v1456, 0
        %v1461 = vunpack.c.l.s4 1983009808
        %v1462 = vunpack.c.0.s8 %v1461
        %v1463 = vlaneseq
        %v1464 = vshrl.u32 %v1463, 7
        %v1465 = vsub.s32 %v1462, %v1464
        %v1466 = vrot.slane %v1421, %v1465
        %v1469 = vunpack.c.l.s4 1983009808
        %v1470 = vunpack.c.0.s8 %v1469
        %v1471 = vlaneseq
        %v1472 = vshrl.u32 %v1471, 7
        %v1473 = vsub.s32 %v1470, %v1472
        %v1474 = vrot.slane %v1425, %v1473
        %v1475 = vcombine.low %v1466, %v1474
        %v1476 = vcombine.high %v1466, %v1474
        %v1478 = vunpack.c.l.s4 1934713408
        %v1479 = vunpack.c.0.s8 %v1478
        %v1480 = vlaneseq
        %v1481 = vshrl.u32 %v1480, 7
        %v1482 = vsub.s32 %v1479, %v1481
        %v1483 = vrot.slane %v1475, %v1482
        %v1485 = vunpack.c.l.s4 1934713408
        %v1486 = vunpack.c.0.s8 %v1485
        %v1487 = vlaneseq
        %v1488 = vshrl.u32 %v1487, 7
        %v1489 = vsub.s32 %v1486, %v1488
        %v1490 = vrot.slane %v1476, %v1489
        %v1491 = vcombine.high %v1483, 0
        %v1492 = vcombine.high %v1490, 0
        %v1495 = vpack.i.b16 %v1483, %v1449
        %v1497 = vshrl.u32 %v1449, 16
        %v1498 = vshrl.u32 %v1483, 16
        %v1499 = vpack.i.b16 %v1498, %v1497
        %v1503 = vpack.i.b16 %v1491, %v1457
        %v1505 = vshrl.u32 %v1457, 16
        %v1506 = vshrl.u32 %v1491, 16
        %v1507 = vpack.i.b16 %v1506, %v1505
        %v1511 = vpack.i.b16 %v1490, %v1456
        %v1513 = vshrl.u32 %v1456, 16
        %v1514 = vshrl.u32 %v1490, 16
        %v1515 = vpack.i.b16 %v1514, %v1513
        %v1519 = vpack.i.b16 %v1492, %v1458
        %v1521 = vshrl.u32 %v1458, 16
        %v1522 = vshrl.u32 %v1492, 16
        %v1523 = vpack.i.b16 %v1522, %v1521
        %v1525 = vcombine.low %v1495, %v1511
        %v1527 = vunpack.c.l.s4 1983009808
        %v1528 = vunpack.c.0.s8 %v1527
        %v1529 = vlaneseq
        %v1530 = vshrl.u32 %v1529, 7
        %v1531 = vsub.s32 %v1528, %v1530
        %v1532 = vrot.slane %v1525, %v1531
        %v1533 = vcombine.low %v1503, %v1519
        %v1535 = vunpack.c.l.s4 1983009808
        %v1536 = vunpack.c.0.s8 %v1535
        %v1537 = vlaneseq
        %v1538 = vshrl.u32 %v1537, 7
        %v1539 = vsub.s32 %v1536, %v1538
        %v1540 = vrot.slane %v1533, %v1539
        %v1541 = vcombine.low %v1532, %v1540
        %v1543 = vunpack.c.l.s4 1934713408
        %v1544 = vunpack.c.0.s8 %v1543
        %v1545 = vlaneseq
        %v1546 = vshrl.u32 %v1545, 7
        %v1547 = vsub.s32 %v1544, %v1546
        %v1548 = vrot.slane %v1541, %v1547
        %v1549 = vcombine.high %v1548, 0
        %v1550 = vcombine.low %v1499, %v1515
        %v1552 = vunpack.c.l.s4 1983009808
        %v1553 = vunpack.c.0.s8 %v1552
        %v1554 = vlaneseq
        %v1555 = vshrl.u32 %v1554, 7
        %v1556 = vsub.s32 %v1553, %v1555
        %v1557 = vrot.slane %v1550, %v1556
        %v1558 = vcombine.low %v1507, %v1523
        %v1560 = vunpack.c.l.s4 1983009808
        %v1561 = vunpack.c.0.s8 %v1560
        %v1562 = vlaneseq
        %v1563 = vshrl.u32 %v1562, 7
        %v1564 = vsub.s32 %v1561, %v1563
        %v1565 = vrot.slane %v1558, %v1564
        %v1566 = vcombine.low %v1557, %v1565
        %v1568 = vunpack.c.l.s4 1934713408
        %v1569 = vunpack.c.0.s8 %v1568
        %v1570 = vlaneseq
        %v1571 = vshrl.u32 %v1570, 7
        %v1572 = vsub.s32 %v1569, %v1571
        %v1573 = vrot.slane %v1566, %v1572
        %v1574 = vcombine.high %v1573, 0
        %v1577 = vpack.i.b16 %v1573, %v1548
        %v1578 = vshrl.u32 %v1548, 16
        %v1579 = vshrl.u32 %v1573, 16
        %v1580 = vpack.i.b16 %v1579, %v1578
        %v1583 = vpack.i.b16 %v1574, %v1549
        %v1584 = vshrl.u32 %v1549, 16
        %v1585 = vshrl.u32 %v1574, 16
        %v1586 = vpack.i.b16 %v1585, %v1584
        %s1587 = smul.u32 %s51, 8
        %s1588 = sadd.s32 %s51, 1
        %v1589 = vlaneseq
        %v1590 = vshrl.u32 %v1589, 7
        %v1591 = vstv %s1587
        %v1592 = vadd.s32 %v1591, %v1590
        // While loop
        $region169: #{tpu_custom_call.1} parent=91 // loop_pre_header
          _
        $region170: #{tpu_custom_call.1} parent=91 // loop_header
          %s1594 = sphi 0, %s1596
          %p1595 = scmp.ge.s32.totalorder %s1594, %s1588
          %v1599 = vphi -inf, %v1838
          %v1600 = vphi -inf, %v1839
          %v1601 = vphi -inf, %v1840
          %v1602 = vphi -inf, %v1841
          %v1603 = vphi 0.0, %v1882
          %v1604 = vphi 0.0, %v1883
          %v1605 = vphi 0.0, %v1884
          %v1606 = vphi 0.0, %v1885
          %v1607 = vphi 0.0, %v2079
          %v1608 = vphi 0.0, %v2080
          %v1609 = vphi 0.0, %v2081
          %v1610 = vphi 0.0, %v2082
        $region171: #{tpu_custom_call.1} parent=91 // loop_header_branch
          %1598 = sbr.rel (%p1595) target = $region175
        $region172: #{tpu_custom_call.1} parent=91 // loop_body
          %s1611 = smul.u32 %s1594, 8
          %s1612 = sshra.s32 %s1611, 3
          %s1613 = sand.u32 %s1611, 7
          %s1614 = smul.addr %s1612, 4
          %s1615 = scalar_lea.vmem [#allocation2], %s1614
          %v1616 = vld [vmem:[%s1615] sm:$0xf]
          %v1617 = vld [vmem:[%s1615 + $0x4] sm:$0xf]
          %v1618 = vld [vmem:[%s1615 + $0x8] sm:$0xf]
          %v1619 = vld [vmem:[%s1615 + $0xc] sm:$0xf]
          %s1620 = smul.addr %s1612, 4
          %s1621 = scalar_lea.vmem [#allocation3], %s1620
          %v1622 = vld [vmem:[%s1621] sm:$0xf]
          %v1623 = vld [vmem:[%s1621 + $0x4] sm:$0xf]
          %v1624 = vld [vmem:[%s1621 + $0x8] sm:$0xf]
          %v1625 = vld [vmem:[%s1621 + $0xc] sm:$0xf]
          %vm1626 = vcmask 64512
          %v1628 = vsel %vm1626, %v1577, 0
          %v1631 = vsel %vm1626, %v1616, 0
          %1633 = vmatprep.subr.bf16.mxu0 0
          %1634 = vmatpush1.bf16.xpose.msra.mxu0 %v1631
          %1635 = vmatprep.subr.bf16.mxu0 0
          %1636 = vmatpush1.bf16.xpose.msra.mxu0 0
          %1637 = vmatprep.subr.bf16.mxu0 0
          %1638 = vmatpush1.bf16.xpose.msra.mxu0 0
          %1639 = vmatprep.subr.bf16.mxu0 0
          %1640 = vmatpush1.bf16.xpose.msra.mxu0 0
          %1641 = vmatprep.subr.bf16.mxu0 0
          %1642 = vmatpush1.bf16.xpose.msra.mxu0 0
          %1643 = vmatprep.subr.bf16.mxu0 0
          %1644 = vmatpush1.bf16.xpose.msra.mxu0 0
          %1645 = vmatprep.subr.bf16.mxu0 0
          %1646 = vmatpush1.bf16.xpose.msra.mxu0 0
          %1647 = vmatprep.subr.bf16.mxu0 0
          %1648 = vmatpush1.bf16.xpose.msra.mxu0 0
          %1649 = vmatprep.subr.bf16.mxu0 0
          %1650 = vmatpush1.bf16.xpose.msra.mxu0 0
          %1651 = vmatprep.subr.bf16.mxu0 0
          %1652 = vmatpush1.bf16.xpose.msra.mxu0 0
          %1653 = vmatprep.subr.bf16.mxu0 0
          %1654 = vmatpush1.bf16.xpose.msra.mxu0 0
          %1655 = vmatprep.subr.bf16.mxu0 0
          %1656 = vmatpush1.bf16.xpose.msra.mxu0 0
          %1657 = vmatprep.subr.bf16.mxu0 0
          %1658 = vmatpush1.bf16.xpose.msra.mxu0 0
          %1659 = vmatprep.subr.bf16.mxu0 0
          %1660 = vmatpush1.bf16.xpose.msra.mxu0 0
          %1661 = vmatprep.subr.bf16.mxu0 0
          %1662 = vmatpush1.bf16.xpose.msra.mxu0 0
          %1663 = vmatprep.subr.bf16.mxu0 0
          %1664 = vmatpush1.bf16.xpose.msra.mxu0 0
          %1665 = vmatprep.mubr.bf16.mxu0 0
          %1666 = vmatmul.mubr.bf16.gmra.mrb[0].mxu0 %v1628
          %v1667 = vpop.f32.mrb[0].mxu0
          %v1668 = vadd.f32 0.0, %v1667
          %v1669 = vpop.f32.mrb[0].mxu0
          %v1670 = vpop.f32.mrb[0].mxu0
          %v1671 = vpop.f32.mrb[0].mxu0
          %1672 = vdwg.mxu0
          %v1674 = vsel %vm1626, %v1580, 0
          %v1677 = vsel %vm1626, %v1617, 0
          %1679 = vmatprep.subr.bf16.mxu0 0
          %1680 = vmatpush1.bf16.xpose.msra.mxu0 %v1677
          %1681 = vmatprep.subr.bf16.mxu0 0
          %1682 = vmatpush1.bf16.xpose.msra.mxu0 0
          %1683 = vmatprep.subr.bf16.mxu0 0
          %1684 = vmatpush1.bf16.xpose.msra.mxu0 0
          %1685 = vmatprep.subr.bf16.mxu0 0
          %1686 = vmatpush1.bf16.xpose.msra.mxu0 0
          %1687 = vmatprep.subr.bf16.mxu0 0
          %1688 = vmatpush1.bf16.xpose.msra.mxu0 0
          %1689 = vmatprep.subr.bf16.mxu0 0
          %1690 = vmatpush1.bf16.xpose.msra.mxu0 0
          %1691 = vmatprep.subr.bf16.mxu0 0
          %1692 = vmatpush1.bf16.xpose.msra.mxu0 0
          %1693 = vmatprep.subr.bf16.mxu0 0
          %1694 = vmatpush1.bf16.xpose.msra.mxu0 0
          %1695 = vmatprep.subr.bf16.mxu0 0
          %1696 = vmatpush1.bf16.xpose.msra.mxu0 0
          %1697 = vmatprep.subr.bf16.mxu0 0
          %1698 = vmatpush1.bf16.xpose.msra.mxu0 0
          %1699 = vmatprep.subr.bf16.mxu0 0
          %1700 = vmatpush1.bf16.xpose.msra.mxu0 0
          %1701 = vmatprep.subr.bf16.mxu0 0
          %1702 = vmatpush1.bf16.xpose.msra.mxu0 0
          %1703 = vmatprep.subr.bf16.mxu0 0
          %1704 = vmatpush1.bf16.xpose.msra.mxu0 0
          %1705 = vmatprep.subr.bf16.mxu0 0
          %1706 = vmatpush1.bf16.xpose.msra.mxu0 0
          %1707 = vmatprep.subr.bf16.mxu0 0
          %1708 = vmatpush1.bf16.xpose.msra.mxu0 0
          %1709 = vmatprep.subr.bf16.mxu0 0
          %1710 = vmatpush1.bf16.xpose.msra.mxu0 0
          %1711 = vmatprep.mubr.bf16.mxu0 0
          %1712 = vmatmul.mubr.bf16.gmra.mrb[0].mxu0 %v1674
          %v1713 = vpop.f32.mrb[0].mxu0
          %v1714 = vadd.f32 0.0, %v1713
          %v1715 = vpop.f32.mrb[0].mxu0
          %v1716 = vpop.f32.mrb[0].mxu0
          %v1717 = vpop.f32.mrb[0].mxu0
          %1718 = vdwg.mxu0
          %v1720 = vsel %vm1626, %v1583, 0
          %v1723 = vsel %vm1626, %v1618, 0
          %1725 = vmatprep.subr.bf16.mxu0 0
          %1726 = vmatpush1.bf16.xpose.msra.mxu0 %v1723
          %1727 = vmatprep.subr.bf16.mxu0 0
          %1728 = vmatpush1.bf16.xpose.msra.mxu0 0
          %1729 = vmatprep.subr.bf16.mxu0 0
          %1730 = vmatpush1.bf16.xpose.msra.mxu0 0
          %1731 = vmatprep.subr.bf16.mxu0 0
          %1732 = vmatpush1.bf16.xpose.msra.mxu0 0
          %1733 = vmatprep.subr.bf16.mxu0 0
          %1734 = vmatpush1.bf16.xpose.msra.mxu0 0
          %1735 = vmatprep.subr.bf16.mxu0 0
          %1736 = vmatpush1.bf16.xpose.msra.mxu0 0
          %1737 = vmatprep.subr.bf16.mxu0 0
          %1738 = vmatpush1.bf16.xpose.msra.mxu0 0
          %1739 = vmatprep.subr.bf16.mxu0 0
          %1740 = vmatpush1.bf16.xpose.msra.mxu0 0
          %1741 = vmatprep.subr.bf16.mxu0 0
          %1742 = vmatpush1.bf16.xpose.msra.mxu0 0
          %1743 = vmatprep.subr.bf16.mxu0 0
          %1744 = vmatpush1.bf16.xpose.msra.mxu0 0
          %1745 = vmatprep.subr.bf16.mxu0 0
          %1746 = vmatpush1.bf16.xpose.msra.mxu0 0
          %1747 = vmatprep.subr.bf16.mxu0 0
          %1748 = vmatpush1.bf16.xpose.msra.mxu0 0
          %1749 = vmatprep.subr.bf16.mxu0 0
          %1750 = vmatpush1.bf16.xpose.msra.mxu0 0
          %1751 = vmatprep.subr.bf16.mxu0 0
          %1752 = vmatpush1.bf16.xpose.msra.mxu0 0
          %1753 = vmatprep.subr.bf16.mxu0 0
          %1754 = vmatpush1.bf16.xpose.msra.mxu0 0
          %1755 = vmatprep.subr.bf16.mxu0 0
          %1756 = vmatpush1.bf16.xpose.msra.mxu0 0
          %1757 = vmatprep.mubr.bf16.mxu0 0
          %1758 = vmatmul.mubr.bf16.gmra.mrb[0].mxu0 %v1720
          %v1759 = vpop.f32.mrb[0].mxu0
          %v1760 = vadd.f32 0.0, %v1759
          %v1761 = vpop.f32.mrb[0].mxu0
          %v1762 = vpop.f32.mrb[0].mxu0
          %v1763 = vpop.f32.mrb[0].mxu0
          %1764 = vdwg.mxu0
          %v1766 = vsel %vm1626, %v1586, 0
          %v1769 = vsel %vm1626, %v1619, 0
          %1771 = vmatprep.subr.bf16.mxu0 0
          %1772 = vmatpush1.bf16.xpose.msra.mxu0 %v1769
          %1773 = vmatprep.subr.bf16.mxu0 0
          %1774 = vmatpush1.bf16.xpose.msra.mxu0 0
          %1775 = vmatprep.subr.bf16.mxu0 0
          %1776 = vmatpush1.bf16.xpose.msra.mxu0 0
          %1777 = vmatprep.subr.bf16.mxu0 0
          %1778 = vmatpush1.bf16.xpose.msra.mxu0 0
          %1779 = vmatprep.subr.bf16.mxu0 0
          %1780 = vmatpush1.bf16.xpose.msra.mxu0 0
          %1781 = vmatprep.subr.bf16.mxu0 0
          %1782 = vmatpush1.bf16.xpose.msra.mxu0 0
          %1783 = vmatprep.subr.bf16.mxu0 0
          %1784 = vmatpush1.bf16.xpose.msra.mxu0 0
          %1785 = vmatprep.subr.bf16.mxu0 0
          %1786 = vmatpush1.bf16.xpose.msra.mxu0 0
          %1787 = vmatprep.subr.bf16.mxu0 0
          %1788 = vmatpush1.bf16.xpose.msra.mxu0 0
          %1789 = vmatprep.subr.bf16.mxu0 0
          %1790 = vmatpush1.bf16.xpose.msra.mxu0 0
          %1791 = vmatprep.subr.bf16.mxu0 0
          %1792 = vmatpush1.bf16.xpose.msra.mxu0 0
          %1793 = vmatprep.subr.bf16.mxu0 0
          %1794 = vmatpush1.bf16.xpose.msra.mxu0 0
          %1795 = vmatprep.subr.bf16.mxu0 0
          %1796 = vmatpush1.bf16.xpose.msra.mxu0 0
          %1797 = vmatprep.subr.bf16.mxu0 0
          %1798 = vmatpush1.bf16.xpose.msra.mxu0 0
          %1799 = vmatprep.subr.bf16.mxu0 0
          %1800 = vmatpush1.bf16.xpose.msra.mxu0 0
          %1801 = vmatprep.subr.bf16.mxu0 0
          %1802 = vmatpush1.bf16.xpose.msra.mxu0 0
          %1803 = vmatprep.mubr.bf16.mxu0 0
          %1804 = vmatmul.mubr.bf16.gmra.mrb[0].mxu0 %v1766
          %v1805 = vpop.f32.mrb[0].mxu0
          %v1806 = vadd.f32 0.0, %v1805
          %v1807 = vpop.f32.mrb[0].mxu0
          %v1808 = vpop.f32.mrb[0].mxu0
          %v1809 = vpop.f32.mrb[0].mxu0
          %1810 = vdwg.mxu0
          %v1811 = vmul.f32 %v1668, 0.35355338
          %v1812 = vmul.f32 %v1714, 0.35355338
          %v1813 = vmul.f32 %v1760, 0.35355338
          %v1814 = vmul.f32 %v1806, 0.35355338
          %v1815 = vlaneseq
          %v1816 = vand.u32 %v1815, 127
          %v1817 = vstv %s1611
          %v1818 = vadd.s32 %v1817, %v1816
          %vm1819 = vcmp.ge.s32.totalorder %v1592, %v1818
          %v1820 = vsel %vm1819, 1, 0
          %vm1821 = vcmp.eq.s32.totalorder %v1820, 1
          %v1822 = vsel %vm1821, %v1811, -1e+30
          %v1823 = vsel %vm1821, %v1812, -1e+30
          %v1824 = vsel %vm1821, %v1813, -1e+30
          %v1825 = vsel %vm1821, %v1814, -1e+30
          %v1826 = vsel %vm1626, %v1822, -inf
          %1827 = vmax.xlane.f32.xlu0 %v1826
          %v1828 = vpop.xlane.xlu0 %1827
          %v1829 = vsel %vm1626, %v1823, -inf
          %1830 = vmax.xlane.f32.xlu0 %v1829
          %v1831 = vpop.xlane.xlu0 %1830
          %v1832 = vsel %vm1626, %v1824, -inf
          %1833 = vmax.xlane.f32.xlu0 %v1832
          %v1834 = vpop.xlane.xlu0 %1833
          %v1835 = vsel %vm1626, %v1825, -inf
          %1836 = vmax.xlane.f32.xlu0 %v1835
          %v1837 = vpop.xlane.xlu0 %1836
          %v1838 = vmax.f32 %v1599, %v1828
          %v1839 = vmax.f32 %v1600, %v1831
          %v1840 = vmax.f32 %v1601, %v1834
          %v1841 = vmax.f32 %v1602, %v1837
          %v1842 = vsub.f32 %v1599, %v1838
          %v1843 = vsub.f32 %v1600, %v1839
          %v1844 = vsub.f32 %v1601, %v1840
          %v1845 = vsub.f32 %v1602, %v1841
          %v1846 = vmul.f32 %v1842, 1.442695
          %v1847 = vpow.pop %v1846
          %v1848 = vmul.f32 %v1843, 1.442695
          %v1849 = vpow.pop %v1848
          %v1850 = vmul.f32 %v1844, 1.442695
          %v1851 = vpow.pop %v1850
          %v1852 = vmul.f32 %v1845, 1.442695
          %v1853 = vpow.pop %v1852
          %v1854 = vsub.f32 %v1822, %v1838
          %v1855 = vsub.f32 %v1823, %v1839
          %v1856 = vsub.f32 %v1824, %v1840
          %v1857 = vsub.f32 %v1825, %v1841
          %v1858 = vmul.f32 %v1854, 1.442695
          %v1859 = vpow.pop %v1858
          %v1860 = vmul.f32 %v1855, 1.442695
          %v1861 = vpow.pop %v1860
          %v1862 = vmul.f32 %v1856, 1.442695
          %v1863 = vpow.pop %v1862
          %v1864 = vmul.f32 %v1857, 1.442695
          %v1865 = vpow.pop %v1864
          %v1866 = vmul.f32 %v1847, %v1603
          %v1867 = vmul.f32 %v1849, %v1604
          %v1868 = vmul.f32 %v1851, %v1605
          %v1869 = vmul.f32 %v1853, %v1606
          %v1870 = vsel %vm1626, %v1859, 0.0
          %1871 = vadd.xlane.f32.xlu0 %v1870
          %v1872 = vpop.xlane.xlu0 %1871
          %v1873 = vsel %vm1626, %v1861, 0.0
          %1874 = vadd.xlane.f32.xlu0 %v1873
          %v1875 = vpop.xlane.xlu0 %1874
          %v1876 = vsel %vm1626, %v1863, 0.0
          %1877 = vadd.xlane.f32.xlu0 %v1876
          %v1878 = vpop.xlane.xlu0 %1877
          %v1879 = vsel %vm1626, %v1865, 0.0
          %1880 = vadd.xlane.f32.xlu0 %v1879
          %v1881 = vpop.xlane.xlu0 %1880
          %v1882 = vadd.f32 %v1866, %v1872
          %v1883 = vadd.f32 %v1867, %v1875
          %v1884 = vadd.f32 %v1868, %v1878
          %v1885 = vadd.f32 %v1869, %v1881
          %v1886 = vmul.f32 %v1847, %v1607
          %v1887 = vmul.f32 %v1849, %v1608
          %v1888 = vmul.f32 %v1851, %v1609
          %v1889 = vmul.f32 %v1853, %v1610
          %v1890 = vpack.c.bf16 %v1859, %v1859
          %v1891 = vpack.c.bf16 %v1861, %v1861
          %v1892 = vpack.c.bf16 %v1863, %v1863
          %v1893 = vpack.c.bf16 %v1865, %v1865
          %v1895 = vsel %vm1626, %v1890, 0
          %vm1897 = vcmask 1043456
          %v1899 = vsel %vm1897, %v1622, 0
          %1901 = vmatprep.subr.bf16.mxu0 0
          %1902 = vmatpush1.bf16.msra.mxu0 %v1899
          %1903 = vmatprep.subr.bf16.mxu0 0
          %1904 = vmatpush1.bf16.msra.mxu0 0
          %1905 = vmatprep.subr.bf16.mxu0 0
          %1906 = vmatpush1.bf16.msra.mxu0 0
          %1907 = vmatprep.subr.bf16.mxu0 0
          %1908 = vmatpush1.bf16.msra.mxu0 0
          %1909 = vmatprep.subr.bf16.mxu0 0
          %1910 = vmatpush1.bf16.msra.mxu0 0
          %1911 = vmatprep.subr.bf16.mxu0 0
          %1912 = vmatpush1.bf16.msra.mxu0 0
          %1913 = vmatprep.subr.bf16.mxu0 0
          %1914 = vmatpush1.bf16.msra.mxu0 0
          %1915 = vmatprep.subr.bf16.mxu0 0
          %1916 = vmatpush1.bf16.msra.mxu0 0
          %1917 = vmatprep.subr.bf16.mxu0 0
          %1918 = vmatpush1.bf16.msra.mxu0 0
          %1919 = vmatprep.subr.bf16.mxu0 0
          %1920 = vmatpush1.bf16.msra.mxu0 0
          %1921 = vmatprep.subr.bf16.mxu0 0
          %1922 = vmatpush1.bf16.msra.mxu0 0
          %1923 = vmatprep.subr.bf16.mxu0 0
          %1924 = vmatpush1.bf16.msra.mxu0 0
          %1925 = vmatprep.subr.bf16.mxu0 0
          %1926 = vmatpush1.bf16.msra.mxu0 0
          %1927 = vmatprep.subr.bf16.mxu0 0
          %1928 = vmatpush1.bf16.msra.mxu0 0
          %1929 = vmatprep.subr.bf16.mxu0 0
          %1930 = vmatpush1.bf16.msra.mxu0 0
          %1931 = vmatprep.subr.bf16.mxu0 0
          %1932 = vmatpush1.bf16.msra.mxu0 0
          %1933 = vmatprep.mubr.bf16.mxu0 0
          %1934 = vmatmul.mubr.bf16.gmra.mrb[0].mxu0 %v1895
          %v1935 = vpop.f32.mrb[0].mxu0
          %v1936 = vadd.f32 0.0, %v1935
          %v1937 = vpop.f32.mrb[0].mxu0
          %v1938 = vpop.f32.mrb[0].mxu0
          %v1939 = vpop.f32.mrb[0].mxu0
          %1940 = vdwg.mxu0
          %v1942 = vsel %vm1626, %v1891, 0
          %v1945 = vsel %vm1897, %v1623, 0
          %1947 = vmatprep.subr.bf16.mxu0 0
          %1948 = vmatpush1.bf16.msra.mxu0 %v1945
          %1949 = vmatprep.subr.bf16.mxu0 0
          %1950 = vmatpush1.bf16.msra.mxu0 0
          %1951 = vmatprep.subr.bf16.mxu0 0
          %1952 = vmatpush1.bf16.msra.mxu0 0
          %1953 = vmatprep.subr.bf16.mxu0 0
          %1954 = vmatpush1.bf16.msra.mxu0 0
          %1955 = vmatprep.subr.bf16.mxu0 0
          %1956 = vmatpush1.bf16.msra.mxu0 0
          %1957 = vmatprep.subr.bf16.mxu0 0
          %1958 = vmatpush1.bf16.msra.mxu0 0
          %1959 = vmatprep.subr.bf16.mxu0 0
          %1960 = vmatpush1.bf16.msra.mxu0 0
          %1961 = vmatprep.subr.bf16.mxu0 0
          %1962 = vmatpush1.bf16.msra.mxu0 0
          %1963 = vmatprep.subr.bf16.mxu0 0
          %1964 = vmatpush1.bf16.msra.mxu0 0
          %1965 = vmatprep.subr.bf16.mxu0 0
          %1966 = vmatpush1.bf16.msra.mxu0 0
          %1967 = vmatprep.subr.bf16.mxu0 0
          %1968 = vmatpush1.bf16.msra.mxu0 0
          %1969 = vmatprep.subr.bf16.mxu0 0
          %1970 = vmatpush1.bf16.msra.mxu0 0
          %1971 = vmatprep.subr.bf16.mxu0 0
          %1972 = vmatpush1.bf16.msra.mxu0 0
          %1973 = vmatprep.subr.bf16.mxu0 0
          %1974 = vmatpush1.bf16.msra.mxu0 0
          %1975 = vmatprep.subr.bf16.mxu0 0
          %1976 = vmatpush1.bf16.msra.mxu0 0
          %1977 = vmatprep.subr.bf16.mxu0 0
          %1978 = vmatpush1.bf16.msra.mxu0 0
          %1979 = vmatprep.mubr.bf16.mxu0 0
          %1980 = vmatmul.mubr.bf16.gmra.mrb[0].mxu0 %v1942
          %v1981 = vpop.f32.mrb[0].mxu0
          %v1982 = vadd.f32 0.0, %v1981
          %v1983 = vpop.f32.mrb[0].mxu0
          %v1984 = vpop.f32.mrb[0].mxu0
          %v1985 = vpop.f32.mrb[0].mxu0
          %1986 = vdwg.mxu0
          %v1988 = vsel %vm1626, %v1892, 0
          %v1991 = vsel %vm1897, %v1624, 0
          %1993 = vmatprep.subr.bf16.mxu0 0
          %1994 = vmatpush1.bf16.msra.mxu0 %v1991
          %1995 = vmatprep.subr.bf16.mxu0 0
          %1996 = vmatpush1.bf16.msra.mxu0 0
          %1997 = vmatprep.subr.bf16.mxu0 0
          %1998 = vmatpush1.bf16.msra.mxu0 0
          %1999 = vmatprep.subr.bf16.mxu0 0
          %2000 = vmatpush1.bf16.msra.mxu0 0
          %2001 = vmatprep.subr.bf16.mxu0 0
          %2002 = vmatpush1.bf16.msra.mxu0 0
          %2003 = vmatprep.subr.bf16.mxu0 0
          %2004 = vmatpush1.bf16.msra.mxu0 0
          %2005 = vmatprep.subr.bf16.mxu0 0
          %2006 = vmatpush1.bf16.msra.mxu0 0
          %2007 = vmatprep.subr.bf16.mxu0 0
          %2008 = vmatpush1.bf16.msra.mxu0 0
          %2009 = vmatprep.subr.bf16.mxu0 0
          %2010 = vmatpush1.bf16.msra.mxu0 0
          %2011 = vmatprep.subr.bf16.mxu0 0
          %2012 = vmatpush1.bf16.msra.mxu0 0
          %2013 = vmatprep.subr.bf16.mxu0 0
          %2014 = vmatpush1.bf16.msra.mxu0 0
          %2015 = vmatprep.subr.bf16.mxu0 0
          %2016 = vmatpush1.bf16.msra.mxu0 0
          %2017 = vmatprep.subr.bf16.mxu0 0
          %2018 = vmatpush1.bf16.msra.mxu0 0
          %2019 = vmatprep.subr.bf16.mxu0 0
          %2020 = vmatpush1.bf16.msra.mxu0 0
          %2021 = vmatprep.subr.bf16.mxu0 0
          %2022 = vmatpush1.bf16.msra.mxu0 0
          %2023 = vmatprep.subr.bf16.mxu0 0
          %2024 = vmatpush1.bf16.msra.mxu0 0
          %2025 = vmatprep.mubr.bf16.mxu0 0
          %2026 = vmatmul.mubr.bf16.gmra.mrb[0].mxu0 %v1988
          %v2027 = vpop.f32.mrb[0].mxu0
          %v2028 = vadd.f32 0.0, %v2027
          %v2029 = vpop.f32.mrb[0].mxu0
          %v2030 = vpop.f32.mrb[0].mxu0
          %v2031 = vpop.f32.mrb[0].mxu0
          %2032 = vdwg.mxu0
          %v2034 = vsel %vm1626, %v1893, 0
          %v2037 = vsel %vm1897, %v1625, 0
          %2039 = vmatprep.subr.bf16.mxu0 0
          %2040 = vmatpush1.bf16.msra.mxu0 %v2037
          %2041 = vmatprep.subr.bf16.mxu0 0
          %2042 = vmatpush1.bf16.msra.mxu0 0
          %2043 = vmatprep.subr.bf16.mxu0 0
          %2044 = vmatpush1.bf16.msra.mxu0 0
          %2045 = vmatprep.subr.bf16.mxu0 0
          %2046 = vmatpush1.bf16.msra.mxu0 0
          %2047 = vmatprep.subr.bf16.mxu0 0
          %2048 = vmatpush1.bf16.msra.mxu0 0
          %2049 = vmatprep.subr.bf16.mxu0 0
          %2050 = vmatpush1.bf16.msra.mxu0 0
          %2051 = vmatprep.subr.bf16.mxu0 0
          %2052 = vmatpush1.bf16.msra.mxu0 0
          %2053 = vmatprep.subr.bf16.mxu0 0
          %2054 = vmatpush1.bf16.msra.mxu0 0
          %2055 = vmatprep.subr.bf16.mxu0 0
          %2056 = vmatpush1.bf16.msra.mxu0 0
          %2057 = vmatprep.subr.bf16.mxu0 0
          %2058 = vmatpush1.bf16.msra.mxu0 0
          %2059 = vmatprep.subr.bf16.mxu0 0
          %2060 = vmatpush1.bf16.msra.mxu0 0
          %2061 = vmatprep.subr.bf16.mxu0 0
          %2062 = vmatpush1.bf16.msra.mxu0 0
          %2063 = vmatprep.subr.bf16.mxu0 0
          %2064 = vmatpush1.bf16.msra.mxu0 0
          %2065 = vmatprep.subr.bf16.mxu0 0
          %2066 = vmatpush1.bf16.msra.mxu0 0
          %2067 = vmatprep.subr.bf16.mxu0 0
          %2068 = vmatpush1.bf16.msra.mxu0 0
          %2069 = vmatprep.subr.bf16.mxu0 0
          %2070 = vmatpush1.bf16.msra.mxu0 0
          %2071 = vmatprep.mubr.bf16.mxu0 0
          %2072 = vmatmul.mubr.bf16.gmra.mrb[0].mxu0 %v2034
          %v2073 = vpop.f32.mrb[0].mxu0
          %v2074 = vadd.f32 0.0, %v2073
          %v2075 = vpop.f32.mrb[0].mxu0
          %v2076 = vpop.f32.mrb[0].mxu0
          %v2077 = vpop.f32.mrb[0].mxu0
          %2078 = vdwg.mxu0
          %v2079 = vadd.f32 %v1886, %v1936
          %v2080 = vadd.f32 %v1887, %v1982
          %v2081 = vadd.f32 %v1888, %v2028
          %v2082 = vadd.f32 %v1889, %v2074
        $region173: #{tpu_custom_call.1} parent=91 // loop_footer
          %s1596 = sadd.s32 %s1594, 1
        $region174: #{tpu_custom_call.1} parent=91 // loop_footer_branch
          %1593 = sbr.rel target = $region170
        $region175: #{tpu_custom_call.1} parent=91 // loop_exit
          _
        %v2083 = vrcp.pop %v1603
        %v2084 = vrcp.pop %v1604
        %v2085 = vrcp.pop %v1605
        %v2086 = vrcp.pop %v1606
        %v2087 = vmul.f32 %v1607, %v2083
        %v2088 = vmul.f32 %v1608, %v2084
        %v2089 = vmul.f32 %v1609, %v2085
        %v2090 = vmul.f32 %v1610, %v2086
        %v2091 = vcombine.low %v2087, %v2089
        %v2092 = vcombine.high %v2087, %v2089
        %v2094 = vunpack.c.l.s4 1983009808
        %v2095 = vunpack.c.0.s8 %v2094
        %v2096 = vlaneseq
        %v2097 = vshrl.u32 %v2096, 7
        %v2098 = vsub.s32 %v2095, %v2097
        %v2099 = vrot.slane %v2091, %v2098
        %v2101 = vunpack.c.l.s4 1983009808
        %v2102 = vunpack.c.0.s8 %v2101
        %v2103 = vlaneseq
        %v2104 = vshrl.u32 %v2103, 7
        %v2105 = vsub.s32 %v2102, %v2104
        %v2106 = vrot.slane %v2092, %v2105
        %v2107 = vcombine.low %v2088, %v2090
        %v2108 = vcombine.high %v2088, %v2090
        %v2110 = vunpack.c.l.s4 1983009808
        %v2111 = vunpack.c.0.s8 %v2110
        %v2112 = vlaneseq
        %v2113 = vshrl.u32 %v2112, 7
        %v2114 = vsub.s32 %v2111, %v2113
        %v2115 = vrot.slane %v2107, %v2114
        %v2117 = vunpack.c.l.s4 1983009808
        %v2118 = vunpack.c.0.s8 %v2117
        %v2119 = vlaneseq
        %v2120 = vshrl.u32 %v2119, 7
        %v2121 = vsub.s32 %v2118, %v2120
        %v2122 = vrot.slane %v2108, %v2121
        %v2123 = vcombine.low %v2099, %v2115
        %v2124 = vcombine.high %v2099, %v2115
        %v2126 = vunpack.c.l.s4 1934713408
        %v2127 = vunpack.c.0.s8 %v2126
        %v2128 = vlaneseq
        %v2129 = vshrl.u32 %v2128, 7
        %v2130 = vsub.s32 %v2127, %v2129
        %v2131 = vrot.slane %v2123, %v2130
        %v2133 = vunpack.c.l.s4 1934713408
        %v2134 = vunpack.c.0.s8 %v2133
        %v2135 = vlaneseq
        %v2136 = vshrl.u32 %v2135, 7
        %v2137 = vsub.s32 %v2134, %v2136
        %v2138 = vrot.slane %v2124, %v2137
        %v2139 = vcombine.low %v2106, %v2122
        %v2140 = vcombine.high %v2106, %v2122
        %v2142 = vunpack.c.l.s4 1934713408
        %v2143 = vunpack.c.0.s8 %v2142
        %v2144 = vlaneseq
        %v2145 = vshrl.u32 %v2144, 7
        %v2146 = vsub.s32 %v2143, %v2145
        %v2147 = vrot.slane %v2139, %v2146
        %v2149 = vunpack.c.l.s4 1934713408
        %v2150 = vunpack.c.0.s8 %v2149
        %v2151 = vlaneseq
        %v2152 = vshrl.u32 %v2151, 7
        %v2153 = vsub.s32 %v2150, %v2152
        %v2154 = vrot.slane %v2140, %v2153
        %v2155 = vcombine.high %v2131, 0.0
        %v2156 = vcombine.high %v2138, 0.0
        %v2157 = vcombine.high %v2147, 0.0
        %v2158 = vcombine.high %v2154, 0.0
        %v2159 = vcombine.low %v2131, %v2138
        %v2161 = vunpack.c.l.s4 1983009808
        %v2162 = vunpack.c.0.s8 %v2161
        %v2163 = vlaneseq
        %v2164 = vshrl.u32 %v2163, 7
        %v2165 = vsub.s32 %v2162, %v2164
        %v2166 = vrot.slane %v2159, %v2165
        %v2167 = vcombine.low %v2155, %v2156
        %v2169 = vunpack.c.l.s4 1983009808
        %v2170 = vunpack.c.0.s8 %v2169
        %v2171 = vlaneseq
        %v2172 = vshrl.u32 %v2171, 7
        %v2173 = vsub.s32 %v2170, %v2172
        %v2174 = vrot.slane %v2167, %v2173
        %v2175 = vcombine.low %v2147, %v2154
        %v2177 = vunpack.c.l.s4 1983009808
        %v2178 = vunpack.c.0.s8 %v2177
        %v2179 = vlaneseq
        %v2180 = vshrl.u32 %v2179, 7
        %v2181 = vsub.s32 %v2178, %v2180
        %v2182 = vrot.slane %v2175, %v2181
        %v2183 = vcombine.low %v2157, %v2158
        %v2185 = vunpack.c.l.s4 1983009808
        %v2186 = vunpack.c.0.s8 %v2185
        %v2187 = vlaneseq
        %v2188 = vshrl.u32 %v2187, 7
        %v2189 = vsub.s32 %v2186, %v2188
        %v2190 = vrot.slane %v2183, %v2189
        %v2191 = vcombine.low %v2166, %v2174
        %v2192 = vcombine.high %v2166, %v2174
        %v2194 = vunpack.c.l.s4 1934713408
        %v2195 = vunpack.c.0.s8 %v2194
        %v2196 = vlaneseq
        %v2197 = vshrl.u32 %v2196, 7
        %v2198 = vsub.s32 %v2195, %v2197
        %v2199 = vrot.slane %v2191, %v2198
        %v2201 = vunpack.c.l.s4 1934713408
        %v2202 = vunpack.c.0.s8 %v2201
        %v2203 = vlaneseq
        %v2204 = vshrl.u32 %v2203, 7
        %v2205 = vsub.s32 %v2202, %v2204
        %v2206 = vrot.slane %v2192, %v2205
        %v2207 = vcombine.low %v2182, %v2190
        %v2208 = vcombine.high %v2182, %v2190
        %v2210 = vunpack.c.l.s4 1934713408
        %v2211 = vunpack.c.0.s8 %v2210
        %v2212 = vlaneseq
        %v2213 = vshrl.u32 %v2212, 7
        %v2214 = vsub.s32 %v2211, %v2213
        %v2215 = vrot.slane %v2207, %v2214
        %v2217 = vunpack.c.l.s4 1934713408
        %v2218 = vunpack.c.0.s8 %v2217
        %v2219 = vlaneseq
        %v2220 = vshrl.u32 %v2219, 7
        %v2221 = vsub.s32 %v2218, %v2220
        %v2222 = vrot.slane %v2208, %v2221
        %v2223 = vcombine.low %v2199, %v2215
        %v2224 = vcombine.high %v2199, %v2215
        %v2225 = vcombine.low %v2206, %v2222
        %v2226 = vcombine.high %v2206, %v2222
        %2228 = vrot.lane.b32.xlu0 %v2224, 8
        %v2229 = vpop.permute.xlu0 %2228
        %2232 = vrot.lane.b32.xlu0 %v2225, 16
        %v2233 = vpop.permute.xlu0 %2232
        %2236 = vrot.lane.b32.xlu0 %v2226, 24
        %v2237 = vpop.permute.xlu0 %2236
        %vm2239 = vcmask 64512
        %v2240 = vsel %vm2239, %v2223, %v2229
        %vm2241 = vcmask 130048
        %v2242 = vsel %vm2241, %v2240, %v2233
        %vm2243 = vcmask 195584
        %v2244 = vsel %vm2243, %v2242, %v2237
        %v2245 = vpack.c.bf16 %v2244, %v2244
        %v2246 = vld [vmem:[#allocation18] sm:$0xf]
        %v2247 = vld [vmem:[#allocation18 + $0x4] sm:$0xf]
        %v2248 = vld [vmem:[#allocation18 + $0x8] sm:$0xf]
        %v2249 = vld [vmem:[#allocation18 + $0xc] sm:$0xf]
        %v2250 = vld [vmem:[#allocation19] sm:$0x1]
        %v2252 = vlaneseq
        %v2253 = vshrl.u32 %v2252, 7
        %v2254 = vsub.s32 0, %v2253
        %v2255 = vrot.slane %v2250, %v2254
        %v2261 = vunpack.c.l.b16 %v2246
        %v2262 = vunpack.c.l.b16 %v2247
        %v2263 = vunpack.c.l.b16 %v2248
        %v2264 = vunpack.c.l.b16 %v2249
        %v2265 = vpack.c.b16 %v2262, %v2261
        %v2266 = vpack.c.b16 %v2264, %v2263
        %v2270 = vsel %vm1374, %v2245, 0
        %2272 = vmatprep.subr.bf16.mxu0 0
        %2273 = vmatpush1.bf16.msra.mxu0 %v2265
        %2274 = vmatprep.subr.bf16.mxu0 0
        %2275 = vmatpush1.bf16.msra.mxu0 %v2266
        %2276 = vmatprep.subr.bf16.mxu0 0
        %2277 = vmatpush1.bf16.msra.mxu0 0
        %2278 = vmatprep.subr.bf16.mxu0 0
        %2279 = vmatpush1.bf16.msra.mxu0 0
        %2280 = vmatprep.subr.bf16.mxu0 0
        %2281 = vmatpush1.bf16.msra.mxu0 0
        %2282 = vmatprep.subr.bf16.mxu0 0
        %2283 = vmatpush1.bf16.msra.mxu0 0
        %2284 = vmatprep.subr.bf16.mxu0 0
        %2285 = vmatpush1.bf16.msra.mxu0 0
        %2286 = vmatprep.subr.bf16.mxu0 0
        %2287 = vmatpush1.bf16.msra.mxu0 0
        %2288 = vmatprep.subr.bf16.mxu0 0
        %2289 = vmatpush1.bf16.msra.mxu0 0
        %2290 = vmatprep.subr.bf16.mxu0 0
        %2291 = vmatpush1.bf16.msra.mxu0 0
        %2292 = vmatprep.subr.bf16.mxu0 0
        %2293 = vmatpush1.bf16.msra.mxu0 0
        %2294 = vmatprep.subr.bf16.mxu0 0
        %2295 = vmatpush1.bf16.msra.mxu0 0
        %2296 = vmatprep.subr.bf16.mxu0 0
        %2297 = vmatpush1.bf16.msra.mxu0 0
        %2298 = vmatprep.subr.bf16.mxu0 0
        %2299 = vmatpush1.bf16.msra.mxu0 0
        %2300 = vmatprep.subr.bf16.mxu0 0
        %2301 = vmatpush1.bf16.msra.mxu0 0
        %2302 = vmatprep.subr.bf16.mxu0 0
        %2303 = vmatpush1.bf16.msra.mxu0 0
        %2304 = vmatprep.mubr.bf16.mxu0 0
        %2305 = vmatmul.mubr.bf16.gmra.mrb[0].mxu0 %v2270
        %v2306 = vpop.f32.mrb[0].mxu0
        %v2307 = vadd.f32 %v2255, %v2306
        %v2308 = vpop.f32.mrb[0].mxu0
        %v2309 = vpop.f32.mrb[0].mxu0
        %v2310 = vpop.f32.mrb[0].mxu0
        %2311 = vdwg.mxu0
        %v2312 = vadd.f32 %v1349, %v2307
        %v2313 = vsel %vm1374, %v2312, 0.0
        %2314 = vadd.xlane.f32.xlu0 %v2313
        %v2315 = vpop.xlane.xlu0 %2314
        %v2316 = vrcp.pop 32.0
        %v2317 = vmul.f32 %v2315, %v2316
        %v2318 = vsub.f32 %v2312, %v2317
        %v2319 = vmul.f32 %v2318, %v2318
        %v2320 = vsel %vm1374, %v2319, 0.0
        %2321 = vadd.xlane.f32.xlu0 %v2320
        %v2322 = vpop.xlane.xlu0 %2321
        %v2323 = vmul.f32 %v2322, %v2316
        %v2324 = vadd.f32 %v2323, 1e-05
        %v2325 = vrsqrt.pop %v2324
        %v2326 = vmul.f32 %v2318, %v2325
        %v2327 = vld [vmem:[#allocation21] sm:$0x1]
        %v2329 = vlaneseq
        %v2330 = vshrl.u32 %v2329, 7
        %v2331 = vsub.s32 0, %v2330
        %v2332 = vrot.slane %v2327, %v2331
        %v2334 = vmul.f32 %v2326, %v2332
        %v2335 = vld [vmem:[#allocation22] sm:$0x1]
        %v2337 = vlaneseq
        %v2338 = vshrl.u32 %v2337, 7
        %v2339 = vsub.s32 0, %v2338
        %v2340 = vrot.slane %v2335, %v2339
        %v2342 = vadd.f32 %v2334, %v2340
        %v2343 = vpack.c.bf16 %v2342, %v2342
        %v2344 = vld [vmem:[#allocation24] sm:$0xf]
        %v2345 = vld [vmem:[#allocation24 + $0x4] sm:$0xf]
        %v2346 = vld [vmem:[#allocation24 + $0x8] sm:$0xf]
        %v2347 = vld [vmem:[#allocation24 + $0xc] sm:$0xf]
        %v2348 = vld [vmem:[#allocation25] sm:$0x1]
        %v2350 = vlaneseq
        %v2351 = vshrl.u32 %v2350, 7
        %v2352 = vsub.s32 0, %v2351
        %v2353 = vrot.slane %v2348, %v2352
        %v2359 = vunpack.c.l.b16 %v2344
        %v2360 = vunpack.c.l.b16 %v2345
        %v2361 = vunpack.c.l.b16 %v2346
        %v2362 = vunpack.c.l.b16 %v2347
        %v2363 = vpack.c.b16 %v2360, %v2359
        %v2364 = vpack.c.b16 %v2362, %v2361
        %v2368 = vsel %vm1374, %v2343, 0
        %2370 = vmatprep.subr.bf16.mxu0 0
        %2371 = vmatpush1.bf16.msra.mxu0 %v2363
        %2372 = vmatprep.subr.bf16.mxu0 0
        %2373 = vmatpush1.bf16.msra.mxu0 %v2364
        %2374 = vmatprep.subr.bf16.mxu0 0
        %2375 = vmatpush1.bf16.msra.mxu0 0
        %2376 = vmatprep.subr.bf16.mxu0 0
        %2377 = vmatpush1.bf16.msra.mxu0 0
        %2378 = vmatprep.subr.bf16.mxu0 0
        %2379 = vmatpush1.bf16.msra.mxu0 0
        %2380 = vmatprep.subr.bf16.mxu0 0
        %2381 = vmatpush1.bf16.msra.mxu0 0
        %2382 = vmatprep.subr.bf16.mxu0 0
        %2383 = vmatpush1.bf16.msra.mxu0 0
        %2384 = vmatprep.subr.bf16.mxu0 0
        %2385 = vmatpush1.bf16.msra.mxu0 0
        %2386 = vmatprep.subr.bf16.mxu0 0
        %2387 = vmatpush1.bf16.msra.mxu0 0
        %2388 = vmatprep.subr.bf16.mxu0 0
        %2389 = vmatpush1.bf16.msra.mxu0 0
        %2390 = vmatprep.subr.bf16.mxu0 0
        %2391 = vmatpush1.bf16.msra.mxu0 0
        %2392 = vmatprep.subr.bf16.mxu0 0
        %2393 = vmatpush1.bf16.msra.mxu0 0
        %2394 = vmatprep.subr.bf16.mxu0 0
        %2395 = vmatpush1.bf16.msra.mxu0 0
        %2396 = vmatprep.subr.bf16.mxu0 0
        %2397 = vmatpush1.bf16.msra.mxu0 0
        %2398 = vmatprep.subr.bf16.mxu0 0
        %2399 = vmatpush1.bf16.msra.mxu0 0
        %2400 = vmatprep.subr.bf16.mxu0 0
        %2401 = vmatpush1.bf16.msra.mxu0 0
        %2402 = vmatprep.mubr.bf16.mxu0 0
        %2403 = vmatmul.mubr.bf16.gmra.mrb[0].mxu0 %v2368
        %v2404 = vpop.f32.mrb[0].mxu0
        %v2405 = vadd.f32 %v2353, %v2404
        %v2406 = vpop.f32.mrb[0].mxu0
        %v2407 = vpop.f32.mrb[0].mxu0
        %v2408 = vpop.f32.mrb[0].mxu0
        %2409 = vdwg.mxu0
        %v2410 = vmax.f32 %v2405, 0.0
        %v2411 = vpack.c.bf16 %v2410, %v2410
        %v2412 = vld [vmem:[#allocation27] sm:$0xf]
        %v2413 = vld [vmem:[#allocation27 + $0x4] sm:$0xf]
        %v2414 = vld [vmem:[#allocation27 + $0x8] sm:$0xf]
        %v2415 = vld [vmem:[#allocation27 + $0xc] sm:$0xf]
        %v2416 = vld [vmem:[#allocation27 + $0x10] sm:$0xf]
        %v2417 = vld [vmem:[#allocation27 + $0x14] sm:$0xf]
        %v2418 = vld [vmem:[#allocation27 + $0x18] sm:$0xf]
        %v2419 = vld [vmem:[#allocation27 + $0x1c] sm:$0xf]
        %v2420 = vld [vmem:[#allocation28] sm:$0x1]
        %v2422 = vlaneseq
        %v2423 = vshrl.u32 %v2422, 7
        %v2424 = vsub.s32 0, %v2423
        %v2425 = vrot.slane %v2420, %v2424
        %v2435 = vunpack.c.l.b16 %v2412
        %v2436 = vunpack.c.l.b16 %v2413
        %v2437 = vunpack.c.l.b16 %v2414
        %v2438 = vunpack.c.l.b16 %v2415
        %v2439 = vunpack.c.l.b16 %v2416
        %v2440 = vunpack.c.l.b16 %v2417
        %v2441 = vunpack.c.l.b16 %v2418
        %v2442 = vunpack.c.l.b16 %v2419
        %v2443 = vpack.c.b16 %v2436, %v2435
        %v2444 = vpack.c.b16 %v2438, %v2437
        %v2445 = vpack.c.b16 %v2440, %v2439
        %v2446 = vpack.c.b16 %v2442, %v2441
        %vm2451 = vcmask 523264
        %v2453 = vsel %vm2451, %v2411, 0
        %2455 = vmatprep.subr.bf16.mxu0 0
        %2456 = vmatpush1.bf16.msra.mxu0 %v2443
        %2457 = vmatprep.subr.bf16.mxu0 0
        %2458 = vmatpush1.bf16.msra.mxu0 %v2444
        %2459 = vmatprep.subr.bf16.mxu0 0
        %2460 = vmatpush1.bf16.msra.mxu0 %v2445
        %2461 = vmatprep.subr.bf16.mxu0 0
        %2462 = vmatpush1.bf16.msra.mxu0 %v2446
        %2463 = vmatprep.subr.bf16.mxu0 0
        %2464 = vmatpush1.bf16.msra.mxu0 0
        %2465 = vmatprep.subr.bf16.mxu0 0
        %2466 = vmatpush1.bf16.msra.mxu0 0
        %2467 = vmatprep.subr.bf16.mxu0 0
        %2468 = vmatpush1.bf16.msra.mxu0 0
        %2469 = vmatprep.subr.bf16.mxu0 0
        %2470 = vmatpush1.bf16.msra.mxu0 0
        %2471 = vmatprep.subr.bf16.mxu0 0
        %2472 = vmatpush1.bf16.msra.mxu0 0
        %2473 = vmatprep.subr.bf16.mxu0 0
        %2474 = vmatpush1.bf16.msra.mxu0 0
        %2475 = vmatprep.subr.bf16.mxu0 0
        %2476 = vmatpush1.bf16.msra.mxu0 0
        %2477 = vmatprep.subr.bf16.mxu0 0
        %2478 = vmatpush1.bf16.msra.mxu0 0
        %2479 = vmatprep.subr.bf16.mxu0 0
        %2480 = vmatpush1.bf16.msra.mxu0 0
        %2481 = vmatprep.subr.bf16.mxu0 0
        %2482 = vmatpush1.bf16.msra.mxu0 0
        %2483 = vmatprep.subr.bf16.mxu0 0
        %2484 = vmatpush1.bf16.msra.mxu0 0
        %2485 = vmatprep.subr.bf16.mxu0 0
        %2486 = vmatpush1.bf16.msra.mxu0 0
        %2487 = vmatprep.mubr.bf16.mxu0 0
        %2488 = vmatmul.mubr.bf16.gmra.mrb[0].mxu0 %v2453
        %v2489 = vpop.f32.mrb[0].mxu0
        %v2490 = vadd.f32 %v2425, %v2489
        %v2491 = vpop.f32.mrb[0].mxu0
        %v2492 = vpop.f32.mrb[0].mxu0
        %v2493 = vpop.f32.mrb[0].mxu0
        %2494 = vdwg.mxu0
        %v2495 = vadd.f32 %v2342, %v2490
        %v2496 = vsel %vm1374, %v2495, 0.0
        %2497 = vadd.xlane.f32.xlu0 %v2496
        %v2498 = vpop.xlane.xlu0 %2497
        %v2499 = vmul.f32 %v2498, %v2316
        %v2500 = vsub.f32 %v2495, %v2499
        %v2501 = vmul.f32 %v2500, %v2500
        %v2502 = vsel %vm1374, %v2501, 0.0
        %2503 = vadd.xlane.f32.xlu0 %v2502
        %v2504 = vpop.xlane.xlu0 %2503
        %v2505 = vmul.f32 %v2504, %v2316
        %v2506 = vadd.f32 %v2505, 1e-05
        %v2507 = vrsqrt.pop %v2506
        %v2508 = vmul.f32 %v2500, %v2507
        %v2509 = vld [vmem:[#allocation30] sm:$0x1]
        %v2511 = vlaneseq
        %v2512 = vshrl.u32 %v2511, 7
        %v2513 = vsub.s32 0, %v2512
        %v2514 = vrot.slane %v2509, %v2513
        %v2516 = vmul.f32 %v2508, %v2514
        %v2517 = vld [vmem:[#allocation31] sm:$0x1]
        %v2519 = vlaneseq
        %v2520 = vshrl.u32 %v2519, 7
        %v2521 = vsub.s32 0, %v2520
        %v2522 = vrot.slane %v2517, %v2521
        %v2524 = vadd.f32 %v2516, %v2522
        %2525 = vst.msk [vmem:[%s856] sm:$0xff] %vm1374, %v2524
        %s2526 = sand.u32 %s458, 1
        %s2527 = scalar_lea.sflag [#allocation6], %s2526
        %s2528 = sand.u32 %s458, 1
        %s2529 = smul.addr %s2528, 8
        %s2530 = scalar_lea.vmem [#allocation33], %s2529
        // Predicated region
        $region176: #{tpu_custom_call.1} parent=91 // pred_check
          %p2531 = pneg %p468
        $region177: #{tpu_custom_call.1} parent=91 // pred_check_branch
          %2533 = sbr.rel (%p2531) target = $region179
        $region178: #{tpu_custom_call.1} parent=91 // pred_region
          %s2535 = ssub.s32 128, 128
          %2536 = vsyncadd %s2527, %s2535
          %s2537 = sadd.s32 %s51, %s50
          %s2538 = smul.addr %s2537, 128
          %s2539 = scalar_lea.hbm %s18, %s2538
          %s2541 = sshll.u32 %s2530, 4
          %s2542 = int_to_ptr.vmem [resolvable:$true] %s2541
          %2544 = dma.vmem_to_hbm [thread:$0]  %s2542, 128, %s2539, %s2527
        $region179: #{tpu_custom_call.1} parent=91 // pred_fallthru
          _
      $region92: #{tpu_custom_call.1} parent=5 // pred_fallthru
        _
      %p2545 = scmp.le.s32.totalorder 2, %s41
      // Predicated region
      $region180: #{tpu_custom_call.1} parent=5 // pred_check
        %p2546 = pneg %p2545
      $region181: #{tpu_custom_call.1} parent=5 // pred_check_branch
        %2548 = sbr.rel (%p2546) target = $region183
      $region182: #{tpu_custom_call.1} parent=5 // pred_region
        %s2549 = ssub.s32 %s41, 2
        // Predicated region
        $region184: #{tpu_custom_call.1} parent=182 // pred_check
          %p2550 = pneg %p474
        $region185: #{tpu_custom_call.1} parent=182 // pred_check_branch
          %2552 = sbr.rel (%p2550) target = $region187
        $region186: #{tpu_custom_call.1} parent=182 // pred_region
          %s2553 = sand.u32 %s459, 1
          %s2554 = scalar_lea.sflag [#allocation6], %s2553
          %s2555 = sand.u32 %s459, 1
          %s2556 = smul.addr %s2555, 8
          %s2557 = scalar_lea.vmem [#allocation33], %s2556
          %2558 = dma.done %s2554, 128
        $region187: #{tpu_custom_call.1} parent=182 // pred_fallthru
          _
      $region183: #{tpu_custom_call.1} parent=5 // pred_fallthru
        _
    $region6: #{tpu_custom_call.1} parent=1 // loop_footer
      %s45 = sadd.s32 1, %s41
    $region7: #{tpu_custom_call.1} parent=1 // loop_footer_branch
      %40 = sbr.rel target = $region3
    $region8: #{tpu_custom_call.1} parent=1 // loop_exit
      _
    %2559 = vsyncpa [#allocation5], 1
    %s2560 = scalar_lea.sflag [#allocation5], 1
    %2561 = vsyncpa %s2560, 1
    %2562 = vsyncpa [#allocation8], 1
    %s2563 = scalar_lea.sflag [#allocation8], 1
    %2564 = vsyncpa %s2563, 1
    %2565 = vsyncpa [#allocation11], 1
    %2566 = vsyncpa [#allocation14], 1
    %2567 = vsyncpa [#allocation17], 1
    %2568 = vsyncpa [#allocation20], 1
    %2569 = vsyncpa [#allocation23], 1
    %2570 = vsyncpa [#allocation26], 1
    %2571 = vsyncpa [#allocation29], 1
    %2572 = vsyncpa [#allocation32], 1
    %2573 = vsyncpa [#allocation6], 1
    %s2574 = scalar_lea.sflag [#allocation6], 1
    %2575 = vsyncpa %s2574, 1

</llo_original>
